<compile_context>
chip_gen: v5e
topology: v5e:2x2
jax: 0.10.0
libtpu: 0.0.40
codegen_flags: <defaults>
</compile_context>

<pallas_src>
import numpy as np
import jax
import jax.numpy as jnp
from jax.experimental import pallas as pl
from jax.experimental.pallas import tpu as pltpu


def _dot(a, b):
    return jnp.dot(a, b, preferred_element_type=jnp.float32)


def _ceil_to(x, m):
    return -(-x // m) * m


def seq_lengths(l_in):
    l1 = l_in - 2
    p1 = l1 // 2
    l2 = p1 - 2
    p2 = l2 // 2
    l3 = p2 - 2
    p3 = l3 // 2
    l4 = p3 - 2
    return l1, p1, l2, p2, l3, p3, l4


# ----------------------------------------------------------------------------
# Load-time constant preprocessing: pack everything into two slabs.
# ----------------------------------------------------------------------------
class _SlabBuilder:
    """Packs small constant matrices into one (rows, 128) slab.  Every entry
    starts at a row offset that is a multiple of `align`, so static in-kernel
    slices stay tile-aligned (16 rows for the bf16 slab, 8 for the f32 slab)."""

    def __init__(self, width=128, align=8):
        self.width, self.align = width, align
        self.blocks, self.offsets, self.rows = [], {}, 0

    def add(self, name, arr):
        arr = np.asarray(arr, np.float32)
        r, c = arr.shape
        assert c <= self.width, (name, arr.shape)
        pad_r = _ceil_to(max(r, 1), self.align)
        buf = np.zeros((pad_r, self.width), np.float32)
        buf[:r, :c] = arr
        self.offsets[name] = (self.rows, r, c)
        self.blocks.append(buf)
        self.rows += pad_r

    def finalize(self, dtype):
        slab = np.concatenate(self.blocks, axis=0)
        return jnp.asarray(slab, dtype), self.offsets


def _bn_affine(bn, eps=1e-5):
    g = np.asarray(bn["gamma"], np.float32)
    b = np.asarray(bn["beta"], np.float32)
    m = np.asarray(bn["mean"], np.float32)
    v = np.asarray(bn["var"], np.float32)
    scale = g / np.sqrt(v + eps)
    return np.stack([scale, b - m * scale], axis=0)               # (2, C)


def _maxpool_select(l_in):
    # Stacked [even-pick ; odd-pick] selection matrix; odd block starts at a
    # 16-aligned row so the in-kernel halves are vreg-aligned slices.
    lp = l_in // 2
    lp_pad = _ceil_to(lp, 16)
    pm = np.zeros((2 * lp_pad, l_in), np.float32)
    r = np.arange(lp)
    pm[r, 2 * r] = 1.0
    pm[lp_pad + r, 2 * r + 1] = 1.0
    return pm, lp, lp_pad


def _tpool_consts(l4, ks, ct):
    # Fused constants for the four TemporalPooling branches:
    #   avg    (R, l4)    : stacked AvgPool1d matrices (row blocks per branch)
    #   interp (l4, R)    : block-placed linear-interp (align_corners) matrices
    #   mask   (R, 4*ct)  : 1 on a branch's own lanes/rows, 0 elsewhere.
    lps = [l4 // k for k in ks]
    assert all(lp * k == l4 for lp, k in zip(lps, ks)), "tpool must tile enc4 length"
    rtot = _ceil_to(sum(lps), 8)
    nb = len(ks)
    avg = np.zeros((rtot, l4), np.float32)
    interp = np.zeros((l4, rtot), np.float32)
    mask = np.zeros((rtot, nb * ct), np.float32)
    den = max(l4 - 1, 1)
    r0 = 0
    for i, (k, lp) in enumerate(zip(ks, lps)):
        for m in range(lp):
            avg[r0 + m, m * k:(m + 1) * k] = 1.0 / k
        if lp == 1:
            interp[:, r0] = 1.0
        else:
            for t in range(l4):
                src = t * (lp - 1) / den
                lo = min(int(np.floor(src)), lp - 2)
                frac = src - lo
                interp[t, r0 + lo] += 1.0 - frac
                interp[t, r0 + lo + 1] += frac
        mask[r0:r0 + lp, i * ct:(i + 1) * ct] = 1.0
        r0 += lp
    return avg, interp, mask


def prepare(params, l_in, eps=1e-5):
    """PyTorch-layout params -> (bf16 matrix slab, f32 aux slab, offsets, cfg)."""
    l1, _, l2, _, l3, _, l4 = seq_lengths(l_in)

    mb = _SlabBuilder(width=128, align=16)     # bf16: everything that feeds the MXU
    ab = _SlabBuilder(width=128, align=8)      # f32: affine vectors / biases / mask

    enc_cfg = []
    for li, name in enumerate(("encoder1", "encoder2", "encoder3", "encoder4")):
        w = np.asarray(params[name]["conv_w"], np.float32)        # (Cout, Cin, 3)
        cout, cin, _ = w.shape
        cin_pad = _ceil_to(max(cin, 16), 16)
        if cin == 1:
            # cin=1 conv is a VPU broadcast, keep its 3 tap rows in the f32 slab.
            ab.add("w1", w[:, 0, :].T)                            # (3, Cout)
        else:
            blk = np.zeros((3 * cin_pad, cout), np.float32)
            for t in range(3):
                blk[t * cin_pad:t * cin_pad + cin, :] = w[:, :, t].T
            mb.add("w%d" % (li + 1), blk)
        ab.add("bn%d" % (li + 1), _bn_affine(params[name]["bn"], eps))
        enc_cfg.append((cin, cin_pad, cout))

    pools = []
    for li, length in enumerate((l1, l2, l3)):
        pm, lp, lp_pad = _maxpool_select(length)
        mb.add("pm%d" % (li + 1), pm)
        pools.append((lp, lp_pad))

    ks = list(params["tpool_ks"])
    ct = np.asarray(params["tpool1"]["conv_w"]).shape[0]
    avg, interp, mask = _tpool_consts(l4, ks, ct)
    mb.add("avg", avg)
    mb.add("wtp", np.concatenate(
        [np.asarray(params["tpool%d" % (i + 1)]["conv_w"], np.float32)[:, :, 0].T
         for i in range(4)], axis=1))                             # (C4, 4*ct)
    mb.add("interp", interp)

    wd = np.asarray(params["decoder_w"], np.float32)              # (Cin, Cout, K)
    kdec = wd.shape[2]
    mb.add("wd", wd.reshape(wd.shape[0], -1))                     # (2*C4, Cout*K)
    eye = np.eye(kdec, dtype=np.float32)
    mb.add("wp", np.kron(np.asarray(params["power_w"], np.float32)[0, :, 0][:, None], eye))
    mb.add("wa", np.kron(np.asarray(params["act_w"], np.float32)[0, :, 0][:, None], eye))

    tpb = np.concatenate([np.asarray(params["tpool%d" % (i + 1)]["conv_b"], np.float32)
                          for i in range(4)])
    tpa = np.concatenate([_bn_affine(params["tpool%d" % (i + 1)]["bn"], eps)
                          for i in range(4)], axis=1)
    ab.add("tpb", np.stack([tpb, tpa[0], tpa[1]], axis=0))        # bias / scale / shift
    ab.add("mask", mask)
    ab.add("hb", np.stack(
        [np.full((kdec,), float(np.asarray(params["power_b"])[0]), np.float32),
         np.full((kdec,), float(np.asarray(params["act_b"])[0]), np.float32)], axis=0))

    slab_mat, mo = mb.finalize(jnp.bfloat16)
    slab_aux, ao = ab.finalize(jnp.float32)
    cfg = dict(l_in=l_in, l4=l4, kdec=kdec, enc=tuple(enc_cfg),
               pools=tuple(pools), c4=enc_cfg[-1][2])
    return slab_mat, slab_aux, mo, ao, cfg


# ----------------------------------------------------------------------------
# Fused kernel + forward wrapper (one pallas_call for the whole network).
# ----------------------------------------------------------------------------
def make_forward(mo, ao, cfg):
    l_in, l4, kdec = cfg["l_in"], cfg["l4"], cfg["kdec"]
    enc_cfg, pools, c4 = cfg["enc"], cfg["pools"], cfg["c4"]

    def kernel(x_ref, mat_ref, aux_ref, out_ref, sp1, sp2, sp3):
        bf16 = jnp.bfloat16

        def mblock(name, roff=0, nrows=None):                     # bf16 slab slice
            r0, r, c = mo[name]
            n = (r - roff) if nrows is None else nrows
            return mat_ref[pl.ds(r0 + roff, n), pl.ds(0, c)]

        def ablock(name, roff=0, nrows=None):                     # f32 slab slice
            r0, r, c = ao[name]
            n = (r - roff) if nrows is None else nrows
            return aux_ref[pl.ds(r0 + roff, n), pl.ds(0, c)]

        def conv_bn_relu(load, lo, layer):
            # 'valid' Conv1d(k=3, no bias) -> ReLU -> BatchNorm affine (running stats).
            cin, cin_pad, cout = enc_cfg[layer]
            acc = None
            for t in range(3):
                xs = load(t, lo)                                  # (lo, cin)
                if layer == 0:                                    # cin == 1: VPU broadcast
                    contrib = xs * ablock("w1", t, 1)             # (lo, cout) f32
                else:
                    contrib = _dot(xs, mblock("w%d" % (layer + 1), t * cin_pad, cin))
                acc = contrib if acc is None else acc + contrib
            y = jnp.maximum(acc, 0.0)
            bname = "bn%d" % (layer + 1)
            return y * ablock(bname, 0, 1) + ablock(bname, 1, 1)

        def maxpool2(pidx, v):
            # MaxPool1d(2,2): one stacked even/odd selection matmul, then max of
            # the two vreg-aligned halves (channels stay lane-dense).
            _, lp_pad = pools[pidx]
            r = _dot(mblock("pm%d" % (pidx + 1)), v.astype(bf16))  # (2*lp_pad, C)
            return jnp.maximum(r[:lp_pad], r[lp_pad:])             # rows >= lp are 0

        # ---- encoder stack --------------------------------------------------
        enc1 = conv_bn_relu(lambda t, lo: x_ref[0, pl.ds(t, lo), :], l_in - 2, 0)
        sp1[...] = maxpool2(0, enc1)
        enc2 = conv_bn_relu(lambda t, lo: sp1[pl.ds(t, lo), :].astype(bf16),
                            pools[0][0] - 2, 1)
        sp2[...] = maxpool2(1, enc2)
        enc3 = conv_bn_relu(lambda t, lo: sp2[pl.ds(t, lo), :].astype(bf16),
                            pools[1][0] - 2, 2)
        sp3[...] = maxpool2(2, enc3)
        enc4 = conv_bn_relu(lambda t, lo: sp3[pl.ds(t, lo), :].astype(bf16),
                            pools[2][0] - 2, 3)                    # (l4, c4) f32
        enc4_bf = enc4.astype(bf16)

        # ---- four TemporalPooling branches, fused (3 matmuls) ---------------
        pooled = _dot(mblock("avg"), enc4_bf)                      # stacked AvgPool1d
        z = _dot(pooled.astype(bf16), mblock("wtp"))               # lane-concat 1x1 convs
        z = jnp.maximum(z + ablock("tpb", 0, 1), 0.0)              # + bias, ReLU
        z = z * ablock("tpb", 1, 1) + ablock("tpb", 2, 1)          # BN affine
        z = z * ablock("mask")                                     # zero cross-branch lanes
        tp = _dot(mblock("interp"), z.astype(bf16))                # (l4, 4*ct)

        # ---- decoder (ConvTranspose1d k=stride=8, folded over the concat) ---
        dec = _dot(enc4_bf, mblock("wd", 0, c4)) \
            + _dot(tp.astype(bf16), mblock("wd", c4, c4))          # (l4, Cout*K)
        dec_bf = dec.astype(bf16)

        # ---- heads: power = 1x1(dec), activation = 1x1(relu(dec)) -----------
        out_ref[0, 0] = _dot(dec_bf, mblock("wp")) + ablock("hb", 0, 1)
        out_ref[0, 1] = _dot(jnp.maximum(dec_bf, 0), mblock("wa")) + ablock("hb", 1, 1)

    def forward(x_ncl, slab_mat, slab_aux):
        b, cin, li = x_ncl.shape
        assert cin == 1 and li == l_in
        x = jnp.transpose(x_ncl, (0, 2, 1)).astype(jnp.float32)    # (B, L, 1): free
        scratch = [pltpu.VMEM((pools[i][1], enc_cfg[i][2]), jnp.float32)
                   for i in range(3)]
        out = pl.pallas_call(
            kernel,
            out_shape=jax.ShapeDtypeStruct((b, 2, l4, kdec), jnp.float32),
            grid=(b,),
            in_specs=[pl.BlockSpec((1, l_in, 1), lambda i: (i, 0, 0)),
                      pl.BlockSpec(slab_mat.shape, lambda i: (0, 0)),
                      pl.BlockSpec(slab_aux.shape, lambda i: (0, 0))],
            out_specs=pl.BlockSpec((1, 2, l4, kdec), lambda i: (i, 0, 0, 0)),
            scratch_shapes=scratch,
            compiler_params=pltpu.CompilerParams(
                dimension_semantics=("parallel",)),
        )(x, slab_mat, slab_aux)
        # Row-major flatten of (L4, K) is exactly the NCL time axis.
        out = out.reshape(b, 2, l4 * kdec)
        return out[:, 0:1, :], out[:, 1:2, :]

    return jax.jit(forward)


# ----------------------------------------------------------------------------
# Pure-JAX (XLA) reference of the PyTorch forward, for validation only.
# ----------------------------------------------------------------------------
_PREC = jax.lax.Precision.HIGHEST


def _ref_forward(x_ncl, params, eps=1e-5):
    def conv1d(x, w, b=None):                                      # x (B,Cin,L), w (Cout,Cin,K)
        k = w.shape[2]
        lo = x.shape[2] - k + 1
        y = sum(jnp.einsum("bcl,oc->bol", x[:, :, t:t + lo], w[:, :, t],
                           precision=_PREC) for t in range(k))
        if b is not None:
            y = y + b[None, :, None]
        return y

    def bn(x, p):
        scale = p["gamma"] / jnp.sqrt(p["var"] + eps)
        shift = p["beta"] - p["mean"] * scale
        return x * scale[None, :, None] + shift[None, :, None]

    def encoder(x, p):
        return bn(jax.nn.relu(conv1d(x, p["conv_w"])), p["bn"])

    def maxpool2(x):
        b, c, l = x.shape
        return x[:, :, :(l // 2) * 2].reshape(b, c, l // 2, 2).max(axis=-1)

    def tpool(x, p, k):
        b, c, l = x.shape
        lp = l // k
        y = x[:, :, :lp * k].reshape(b, c, lp, k).mean(axis=-1)
        y = bn(jax.nn.relu(conv1d(y, p["conv_w"], p["conv_b"])), p["bn"])
        lout = lp * k
        if lp == 1:
            return jnp.broadcast_to(y, (b, y.shape[1], lout))
        t = jnp.arange(lout, dtype=jnp.float32)
        src = t * (lp - 1) / (lout - 1)
        low = jnp.clip(jnp.floor(src).astype(jnp.int32), 0, lp - 2)
        frac = src - low
        return (jnp.take(y, low, axis=2) * (1.0 - frac)
                + jnp.take(y, low + 1, axis=2) * frac)

    enc1 = encoder(x_ncl, params["encoder1"])
    enc2 = encoder(maxpool2(enc1), params["encoder2"])
    enc3 = encoder(maxpool2(enc2), params["encoder3"])
    enc4 = encoder(maxpool2(enc3), params["encoder4"])
    tps = [tpool(enc4, params["tpool%d" % (i + 1)], params["tpool_ks"][i])
           for i in range(4)]
    cat = jnp.concatenate([enc4] + tps, axis=1)
    wd = params["decoder_w"]
    dec = jnp.einsum("bcl,cok->bolk", cat, wd, precision=_PREC)
    dec = dec.reshape(cat.shape[0], wd.shape[1], -1)
    pw = (jnp.einsum("bcl,oc->bol", dec, params["power_w"][:, :, 0], precision=_PREC)
          + params["power_b"][None, :, None])
    act = (jnp.einsum("bcl,oc->bol", jax.nn.relu(dec), params["act_w"][:, :, 0],
                      precision=_PREC) + params["act_b"][None, :, None])
    return pw, act


# ----------------------------------------------------------------------------
# Deterministic synthetic parameters (no checkpoint).
# ----------------------------------------------------------------------------
def _init(key, shape, scale=0.1):
    return scale * jax.random.normal(key, shape, jnp.float32)


def _init_bn(key, c):
    k1, k2, k3, k4 = jax.random.split(key, 4)
    return {"gamma": 1.0 + 0.1 * jax.random.normal(k1, (c,), jnp.float32),
            "beta": 0.1 * jax.random.normal(k2, (c,), jnp.float32),
            "mean": 0.1 * jax.random.normal(k3, (c,), jnp.float32),
            "var": 1.0 + 0.1 * jax.random.uniform(k4, (c,), jnp.float32)}


def init_params(key, output_len=96, out_channels=1, features=8):
    s = output_len / 8
    tpool_ks = [int(s / 12), int(s / 6), int(s / 3), int(s / 2)]
    keys = iter(jax.random.split(key, 64))
    nk = lambda: next(keys)

    def enc(cin, cout, ksz):
        return {"conv_w": _init(nk(), (cout, cin, ksz)), "bn": _init_bn(nk(), cout)}

    def tp(cin, cout):
        return {"conv_w": _init(nk(), (cout, cin, 1)),
                "conv_b": _init(nk(), (cout,)), "bn": _init_bn(nk(), cout)}

    f = features
    return {
        "encoder1": enc(1, f, 3),
        "encoder2": enc(f, 2 * f, 3),
        "encoder3": enc(2 * f, 4 * f, 3),
        "encoder4": enc(4 * f, 8 * f, 3),
        "tpool1": tp(8 * f, 2 * f),
        "tpool2": tp(8 * f, 2 * f),
        "tpool3": tp(8 * f, 2 * f),
        "tpool4": tp(8 * f, 2 * f),
        "tpool_ks": tpool_ks,
        "decoder_w": _init(nk(), (2 * 8 * f, f, 8)),   # ConvTranspose1d(16f, f, 8, 8)
        "power_w": _init(nk(), (out_channels, f, 1)),
        "power_b": _init(nk(), (out_channels,)),
        "act_w": _init(nk(), (out_channels, f, 1)),
        "act_b": _init(nk(), (out_channels,)),
    }


if __name__ == "__main__":
    # PTPNet(output_len=96, init_features=8): input length 126 -> enc4 length 12
    # -> decoder output length 96.
    OUTPUT_LEN, FEATURES, BATCH, L_IN = 96, 8, 2, 126

    key = jax.random.PRNGKey(0)
    kx, kp = jax.random.split(key)
    x = jax.random.normal(kx, (BATCH, 1, L_IN), jnp.float32)       # PyTorch NCL
    params = init_params(kp, output_len=OUTPUT_LEN, features=FEATURES)

    slab_mat, slab_aux, mo, ao, cfg = prepare(params, L_IN)        # hoisted to load time
    fwd = make_forward(mo, ao, cfg)
    pw, act = jax.block_until_ready(fwd(x, slab_mat, slab_aux))

    assert pw.shape == (BATCH, 1, OUTPUT_LEN), pw.shape
    assert act.shape == (BATCH, 1, OUTPUT_LEN), act.shape
    assert bool(jnp.all(jnp.isfinite(pw))) and bool(jnp.all(jnp.isfinite(act)))

    # Validate against a plain-JAX (f32, HIGHEST precision) reference of the
    # PyTorch graph.  Kernel uses bf16 MXU inputs with f32 accumulation.
    pw_ref, act_ref = _ref_forward(x, params)
    assert jnp.allclose(pw, pw_ref, rtol=2e-2, atol=2e-2)
    assert jnp.allclose(act, act_ref, rtol=2e-2, atol=2e-2)

    print("KERNEL_OK")
</pallas_src>

<mosaic_0001>
module attributes {stable_mosaic.version = 11 : i64} {
  func.func @kernel(%arg0: i32, %arg1: memref<1x126x1xf32, #tpu.memory_space<vmem>>, %arg2: memref<784x128xbf16, #tpu.memory_space<vmem>>, %arg3: memref<80x128xf32, #tpu.memory_space<vmem>>, %arg4: memref<1x2x12x8xf32, #tpu.memory_space<vmem>>, %arg5: memref<64x8xf32, #tpu.memory_space<vmem>>, %arg6: memref<32x16xf32, #tpu.memory_space<vmem>>, %arg7: memref<16x32xf32, #tpu.memory_space<vmem>>) attributes {dimension_semantics = [#tpu.dimension_semantics<parallel>], iteration_bounds = array<i64: 2>, scalar_prefetch = 0 : i64, scratch_operands = 3 : i64, tpu.core_type = #tpu.core_type<tc>, window_params = [{transform_indices = @transform_0, window_bounds = array<i64: 1, 126, 1>}, {pipeline_mode = #tpu.pipeline_mode<synchronous>, transform_indices = @transform_1, window_bounds = array<i64: 784, 128>}, {pipeline_mode = #tpu.pipeline_mode<synchronous>, transform_indices = @transform_2, window_bounds = array<i64: 80, 128>}, {transform_indices = @transform_3, window_bounds = array<i64: 1, 2, 12, 8>}]} {
    %c0 = arith.constant 0 : index
    %c0_0 = arith.constant 0 : index
    %c0_1 = arith.constant 0 : index
    %0 = vector.load %arg1[%c0, %c0_0, %c0_1] : memref<1x126x1xf32, #tpu.memory_space<vmem>>, vector<1x124x1xf32>
    %1 = vector.shape_cast %0 : vector<1x124x1xf32> to vector<124x1xf32>
    %c0_2 = arith.constant 0 : index
    %c0_3 = arith.constant 0 : index
    %2 = vector.load %arg3[%c0_2, %c0_3] : memref<80x128xf32, #tpu.memory_space<vmem>>, vector<1x8xf32>
    %3 = vector.broadcast %1 : vector<124x1xf32> to vector<124x8xf32>
    %4 = vector.broadcast %2 : vector<1x8xf32> to vector<124x8xf32>
    %5 = arith.mulf %3, %4 : vector<124x8xf32>
    %c0_4 = arith.constant 0 : index
    %c1 = arith.constant 1 : index
    %c0_5 = arith.constant 0 : index
    %6 = vector.load %arg1[%c0_4, %c1, %c0_5] : memref<1x126x1xf32, #tpu.memory_space<vmem>>, vector<1x124x1xf32>
    %7 = vector.shape_cast %6 : vector<1x124x1xf32> to vector<124x1xf32>
    %c1_6 = arith.constant 1 : index
    %c0_7 = arith.constant 0 : index
    %8 = vector.load %arg3[%c1_6, %c0_7] : memref<80x128xf32, #tpu.memory_space<vmem>>, vector<1x8xf32>
    %9 = vector.broadcast %7 : vector<124x1xf32> to vector<124x8xf32>
    %10 = vector.broadcast %8 : vector<1x8xf32> to vector<124x8xf32>
    %11 = arith.mulf %9, %10 : vector<124x8xf32>
    %12 = arith.addf %5, %11 : vector<124x8xf32>
    %c0_8 = arith.constant 0 : index
    %c2 = arith.constant 2 : index
    %c0_9 = arith.constant 0 : index
    %13 = vector.load %arg1[%c0_8, %c2, %c0_9] : memref<1x126x1xf32, #tpu.memory_space<vmem>>, vector<1x124x1xf32>
    %14 = vector.shape_cast %13 : vector<1x124x1xf32> to vector<124x1xf32>
    %c2_10 = arith.constant 2 : index
    %c0_11 = arith.constant 0 : index
    %15 = vector.load %arg3[%c2_10, %c0_11] : memref<80x128xf32, #tpu.memory_space<vmem>>, vector<1x8xf32>
    %16 = vector.broadcast %14 : vector<124x1xf32> to vector<124x8xf32>
    %17 = vector.broadcast %15 : vector<1x8xf32> to vector<124x8xf32>
    %18 = arith.mulf %16, %17 : vector<124x8xf32>
    %19 = arith.addf %12, %18 : vector<124x8xf32>
    %cst = arith.constant 0.000000e+00 : f32
    %20 = vector.broadcast %cst : f32 to vector<124x8xf32>
    %21 = arith.maximumf %19, %20 : vector<124x8xf32>
    %c8 = arith.constant 8 : index
    %c0_12 = arith.constant 0 : index
    %22 = vector.load %arg3[%c8, %c0_12] : memref<80x128xf32, #tpu.memory_space<vmem>>, vector<1x8xf32>
    %23 = vector.broadcast %22 : vector<1x8xf32> to vector<124x8xf32>
    %24 = arith.mulf %21, %23 : vector<124x8xf32>
    %c9 = arith.constant 9 : index
    %c0_13 = arith.constant 0 : index
    %25 = vector.load %arg3[%c9, %c0_13] : memref<80x128xf32, #tpu.memory_space<vmem>>, vector<1x8xf32>
    %26 = vector.broadcast %25 : vector<1x8xf32> to vector<124x8xf32>
    %27 = arith.addf %24, %26 : vector<124x8xf32>
    %c192 = arith.constant 192 : index
    %c0_14 = arith.constant 0 : index
    %28 = vector.load %arg2[%c192, %c0_14] : memref<784x128xbf16, #tpu.memory_space<vmem>>, vector<128x124xbf16>
    %29 = arith.truncf %27 : vector<124x8xf32> to vector<124x8xbf16>
    %cst_15 = arith.constant dense<0.000000e+00> : vector<128x8xf32>
    %30 = tpu.matmul %28, %29, %cst_15 {dimension_numbers = #tpu.dot_dimension_numbers<[1], [0], [0], [1], [0, 0, 1, 1], [], []>} : vector<128x124xbf16>, vector<124x8xbf16>, vector<128x8xf32> -> vector<128x8xf32>
    %31 = vector.extract_strided_slice %30 {offsets = [0, 0], sizes = [64, 8], strides = [1, 1]} : vector<128x8xf32> to vector<64x8xf32>
    %32 = vector.extract_strided_slice %30 {offsets = [64, 0], sizes = [64, 8], strides = [1, 1]} : vector<128x8xf32> to vector<64x8xf32>
    %33 = arith.maximumf %31, %32 : vector<64x8xf32>
    %c0_16 = arith.constant 0 : index
    %c0_17 = arith.constant 0 : index
    %34 = vector.load %arg5[%c0_16, %c0_17] : memref<64x8xf32, #tpu.memory_space<vmem>>, vector<64x8xf32>
    tpu.vector_store %arg5[%c0_16, %c0_17], %33 {strides = array<i32>} : memref<64x8xf32, #tpu.memory_space<vmem>>, vector<64x8xf32>,
    %c0_18 = arith.constant 0 : index
    %c0_19 = arith.constant 0 : index
    %35 = vector.load %arg5[%c0_18, %c0_19] : memref<64x8xf32, #tpu.memory_space<vmem>>, vector<60x8xf32>
    %36 = arith.truncf %35 : vector<60x8xf32> to vector<60x8xbf16>
    %c0_20 = arith.constant 0 : index
    %c0_21 = arith.constant 0 : index
    %37 = vector.load %arg2[%c0_20, %c0_21] : memref<784x128xbf16, #tpu.memory_space<vmem>>, vector<8x16xbf16>
    %cst_22 = arith.constant dense<0.000000e+00> : vector<60x16xf32>
    %38 = tpu.matmul %36, %37, %cst_22 {dimension_numbers = #tpu.dot_dimension_numbers<[1], [0], [0], [1], [0, 0, 1, 1], [], []>} : vector<60x8xbf16>, vector<8x16xbf16>, vector<60x16xf32> -> vector<60x16xf32>
    %c1_23 = arith.constant 1 : index
    %c0_24 = arith.constant 0 : index
    %39 = vector.load %arg5[%c1_23, %c0_24] : memref<64x8xf32, #tpu.memory_space<vmem>>, vector<60x8xf32>
    %40 = arith.truncf %39 : vector<60x8xf32> to vector<60x8xbf16>
    %c16 = arith.constant 16 : index
    %c0_25 = arith.constant 0 : index
    %41 = vector.load %arg2[%c16, %c0_25] : memref<784x128xbf16, #tpu.memory_space<vmem>>, vector<8x16xbf16>
    %cst_26 = arith.constant dense<0.000000e+00> : vector<60x16xf32>
    %42 = tpu.matmul %40, %41, %cst_26 {dimension_numbers = #tpu.dot_dimension_numbers<[1], [0], [0], [1], [0, 0, 1, 1], [], []>} : vector<60x8xbf16>, vector<8x16xbf16>, vector<60x16xf32> -> vector<60x16xf32>
    %43 = arith.addf %38, %42 : vector<60x16xf32>
    %c2_27 = arith.constant 2 : index
    %c0_28 = arith.constant 0 : index
    %44 = vector.load %arg5[%c2_27, %c0_28] : memref<64x8xf32, #tpu.memory_space<vmem>>, vector<60x8xf32>
    %45 = arith.truncf %44 : vector<60x8xf32> to vector<60x8xbf16>
    %c32 = arith.constant 32 : index
    %c0_29 = arith.constant 0 : index
    %46 = vector.load %arg2[%c32, %c0_29] : memref<784x128xbf16, #tpu.memory_space<vmem>>, vector<8x16xbf16>
    %cst_30 = arith.constant dense<0.000000e+00> : vector<60x16xf32>
    %47 = tpu.matmul %45, %46, %cst_30 {dimension_numbers = #tpu.dot_dimension_numbers<[1], [0], [0], [1], [0, 0, 1, 1], [], []>} : vector<60x8xbf16>, vector<8x16xbf16>, vector<60x16xf32> -> vector<60x16xf32>
    %48 = arith.addf %43, %47 : vector<60x16xf32>
    %cst_31 = arith.constant 0.000000e+00 : f32
    %49 = vector.broadcast %cst_31 : f32 to vector<60x16xf32>
    %50 = arith.maximumf %48, %49 : vector<60x16xf32>
    %c16_32 = arith.constant 16 : index
    %c0_33 = arith.constant 0 : index
    %51 = vector.load %arg3[%c16_32, %c0_33] : memref<80x128xf32, #tpu.memory_space<vmem>>, vector<1x16xf32>
    %52 = vector.broadcast %51 : vector<1x16xf32> to vector<60x16xf32>
    %53 = arith.mulf %50, %52 : vector<60x16xf32>
    %c17 = arith.constant 17 : index
    %c0_34 = arith.constant 0 : index
    %54 = vector.load %arg3[%c17, %c0_34] : memref<80x128xf32, #tpu.memory_space<vmem>>, vector<1x16xf32>
    %55 = vector.broadcast %54 : vector<1x16xf32> to vector<60x16xf32>
    %56 = arith.addf %53, %55 : vector<60x16xf32>
    %c320 = arith.constant 320 : index
    %c0_35 = arith.constant 0 : index
    %57 = vector.load %arg2[%c320, %c0_35] : memref<784x128xbf16, #tpu.memory_space<vmem>>, vector<64x60xbf16>
    %58 = arith.truncf %56 : vector<60x16xf32> to vector<60x16xbf16>
    %cst_36 = arith.constant dense<0.000000e+00> : vector<64x16xf32>
    %59 = tpu.matmul %57, %58, %cst_36 {dimension_numbers = #tpu.dot_dimension_numbers<[1], [0], [0], [1], [0, 0, 1, 1], [], []>} : vector<64x60xbf16>, vector<60x16xbf16>, vector<64x16xf32> -> vector<64x16xf32>
    %60 = vector.extract_strided_slice %59 {offsets = [0, 0], sizes = [32, 16], strides = [1, 1]} : vector<64x16xf32> to vector<32x16xf32>
    %61 = vector.extract_strided_slice %59 {offsets = [32, 0], sizes = [32, 16], strides = [1, 1]} : vector<64x16xf32> to vector<32x16xf32>
    %62 = arith.maximumf %60, %61 : vector<32x16xf32>
    %c0_37 = arith.constant 0 : index
    %c0_38 = arith.constant 0 : index
    %63 = vector.load %arg6[%c0_37, %c0_38] : memref<32x16xf32, #tpu.memory_space<vmem>>, vector<32x16xf32>
    tpu.vector_store %arg6[%c0_37, %c0_38], %62 {strides = array<i32>} : memref<32x16xf32, #tpu.memory_space<vmem>>, vector<32x16xf32>,
    %c0_39 = arith.constant 0 : index
    %c0_40 = arith.constant 0 : index
    %64 = vector.load %arg6[%c0_39, %c0_40] : memref<32x16xf32, #tpu.memory_space<vmem>>, vector<28x16xf32>
    %65 = arith.truncf %64 : vector<28x16xf32> to vector<28x16xbf16>
    %c48 = arith.constant 48 : index
    %c0_41 = arith.constant 0 : index
    %66 = vector.load %arg2[%c48, %c0_41] : memref<784x128xbf16, #tpu.memory_space<vmem>>, vector<16x32xbf16>
    %cst_42 = arith.constant dense<0.000000e+00> : vector<28x32xf32>
    %67 = tpu.matmul %65, %66, %cst_42 {dimension_numbers = #tpu.dot_dimension_numbers<[1], [0], [0], [1], [0, 0, 1, 1], [], []>} : vector<28x16xbf16>, vector<16x32xbf16>, vector<28x32xf32> -> vector<28x32xf32>
    %c1_43 = arith.constant 1 : index
    %c0_44 = arith.constant 0 : index
    %68 = vector.load %arg6[%c1_43, %c0_44] : memref<32x16xf32, #tpu.memory_space<vmem>>, vector<28x16xf32>
    %69 = arith.truncf %68 : vector<28x16xf32> to vector<28x16xbf16>
    %c64 = arith.constant 64 : index
    %c0_45 = arith.constant 0 : index
    %70 = vector.load %arg2[%c64, %c0_45] : memref<784x128xbf16, #tpu.memory_space<vmem>>, vector<16x32xbf16>
    %cst_46 = arith.constant dense<0.000000e+00> : vector<28x32xf32>
    %71 = tpu.matmul %69, %70, %cst_46 {dimension_numbers = #tpu.dot_dimension_numbers<[1], [0], [0], [1], [0, 0, 1, 1], [], []>} : vector<28x16xbf16>, vector<16x32xbf16>, vector<28x32xf32> -> vector<28x32xf32>
    %72 = arith.addf %67, %71 : vector<28x32xf32>
    %c2_47 = arith.constant 2 : index
    %c0_48 = arith.constant 0 : index
    %73 = vector.load %arg6[%c2_47, %c0_48] : memref<32x16xf32, #tpu.memory_space<vmem>>, vector<28x16xf32>
    %74 = arith.truncf %73 : vector<28x16xf32> to vector<28x16xbf16>
    %c80 = arith.constant 80 : index
    %c0_49 = arith.constant 0 : index
    %75 = vector.load %arg2[%c80, %c0_49] : memref<784x128xbf16, #tpu.memory_space<vmem>>, vector<16x32xbf16>
    %cst_50 = arith.constant dense<0.000000e+00> : vector<28x32xf32>
    %76 = tpu.matmul %74, %75, %cst_50 {dimension_numbers = #tpu.dot_dimension_numbers<[1], [0], [0], [1], [0, 0, 1, 1], [], []>} : vector<28x16xbf16>, vector<16x32xbf16>, vector<28x32xf32> -> vector<28x32xf32>
    %77 = arith.addf %72, %76 : vector<28x32xf32>
    %cst_51 = arith.constant 0.000000e+00 : f32
    %78 = vector.broadcast %cst_51 : f32 to vector<28x32xf32>
    %79 = arith.maximumf %77, %78 : vector<28x32xf32>
    %c24 = arith.constant 24 : index
    %c0_52 = arith.constant 0 : index
    %80 = vector.load %arg3[%c24, %c0_52] : memref<80x128xf32, #tpu.memory_space<vmem>>, vector<1x32xf32>
    %81 = vector.broadcast %80 : vector<1x32xf32> to vector<28x32xf32>
    %82 = arith.mulf %79, %81 : vector<28x32xf32>
    %c25 = arith.constant 25 : index
    %c0_53 = arith.constant 0 : index
    %83 = vector.load %arg3[%c25, %c0_53] : memref<80x128xf32, #tpu.memory_space<vmem>>, vector<1x32xf32>
    %84 = vector.broadcast %83 : vector<1x32xf32> to vector<28x32xf32>
    %85 = arith.addf %82, %84 : vector<28x32xf32>
    %c384 = arith.constant 384 : index
    %c0_54 = arith.constant 0 : index
    %86 = vector.load %arg2[%c384, %c0_54] : memref<784x128xbf16, #tpu.memory_space<vmem>>, vector<32x28xbf16>
    %87 = arith.truncf %85 : vector<28x32xf32> to vector<28x32xbf16>
    %cst_55 = arith.constant dense<0.000000e+00> : vector<32x32xf32>
    %88 = tpu.matmul %86, %87, %cst_55 {dimension_numbers = #tpu.dot_dimension_numbers<[1], [0], [0], [1], [0, 0, 1, 1], [], []>} : vector<32x28xbf16>, vector<28x32xbf16>, vector<32x32xf32> -> vector<32x32xf32>
    %89 = vector.extract_strided_slice %88 {offsets = [0, 0], sizes = [16, 32], strides = [1, 1]} : vector<32x32xf32> to vector<16x32xf32>
    %90 = vector.extract_strided_slice %88 {offsets = [16, 0], sizes = [16, 32], strides = [1, 1]} : vector<32x32xf32> to vector<16x32xf32>
    %91 = arith.maximumf %89, %90 : vector<16x32xf32>
    %c0_56 = arith.constant 0 : index
    %c0_57 = arith.constant 0 : index
    %92 = vector.load %arg7[%c0_56, %c0_57] : memref<16x32xf32, #tpu.memory_space<vmem>>, vector<16x32xf32>
    tpu.vector_store %arg7[%c0_56, %c0_57], %91 {strides = array<i32>} : memref<16x32xf32, #tpu.memory_space<vmem>>, vector<16x32xf32>,
    %c0_58 = arith.constant 0 : index
    %c0_59 = arith.constant 0 : index
    %93 = vector.load %arg7[%c0_58, %c0_59] : memref<16x32xf32, #tpu.memory_space<vmem>>, vector<12x32xf32>
    %94 = arith.truncf %93 : vector<12x32xf32> to vector<12x32xbf16>
    %c96 = arith.constant 96 : index
    %c0_60 = arith.constant 0 : index
    %95 = vector.load %arg2[%c96, %c0_60] : memref<784x128xbf16, #tpu.memory_space<vmem>>, vector<32x64xbf16>
    %cst_61 = arith.constant dense<0.000000e+00> : vector<12x64xf32>
    %96 = tpu.matmul %94, %95, %cst_61 {dimension_numbers = #tpu.dot_dimension_numbers<[1], [0], [0], [1], [0, 0, 1, 1], [], []>} : vector<12x32xbf16>, vector<32x64xbf16>, vector<12x64xf32> -> vector<12x64xf32>
    %c1_62 = arith.constant 1 : index
    %c0_63 = arith.constant 0 : index
    %97 = vector.load %arg7[%c1_62, %c0_63] : memref<16x32xf32, #tpu.memory_space<vmem>>, vector<12x32xf32>
    %98 = arith.truncf %97 : vector<12x32xf32> to vector<12x32xbf16>
    %c128 = arith.constant 128 : index
    %c0_64 = arith.constant 0 : index
    %99 = vector.load %arg2[%c128, %c0_64] : memref<784x128xbf16, #tpu.memory_space<vmem>>, vector<32x64xbf16>
    %cst_65 = arith.constant dense<0.000000e+00> : vector<12x64xf32>
    %100 = tpu.matmul %98, %99, %cst_65 {dimension_numbers = #tpu.dot_dimension_numbers<[1], [0], [0], [1], [0, 0, 1, 1], [], []>} : vector<12x32xbf16>, vector<32x64xbf16>, vector<12x64xf32> -> vector<12x64xf32>
    %101 = arith.addf %96, %100 : vector<12x64xf32>
    %c2_66 = arith.constant 2 : index
    %c0_67 = arith.constant 0 : index
    %102 = vector.load %arg7[%c2_66, %c0_67] : memref<16x32xf32, #tpu.memory_space<vmem>>, vector<12x32xf32>
    %103 = arith.truncf %102 : vector<12x32xf32> to vector<12x32xbf16>
    %c160 = arith.constant 160 : index
    %c0_68 = arith.constant 0 : index
    %104 = vector.load %arg2[%c160, %c0_68] : memref<784x128xbf16, #tpu.memory_space<vmem>>, vector<32x64xbf16>
    %cst_69 = arith.constant dense<0.000000e+00> : vector<12x64xf32>
    %105 = tpu.matmul %103, %104, %cst_69 {dimension_numbers = #tpu.dot_dimension_numbers<[1], [0], [0], [1], [0, 0, 1, 1], [], []>} : vector<12x32xbf16>, vector<32x64xbf16>, vector<12x64xf32> -> vector<12x64xf32>
    %106 = arith.addf %101, %105 : vector<12x64xf32>
    %cst_70 = arith.constant 0.000000e+00 : f32
    %107 = vector.broadcast %cst_70 : f32 to vector<12x64xf32>
    %108 = arith.maximumf %106, %107 : vector<12x64xf32>
    %c32_71 = arith.constant 32 : index
    %c0_72 = arith.constant 0 : index
    %109 = vector.load %arg3[%c32_71, %c0_72] : memref<80x128xf32, #tpu.memory_space<vmem>>, vector<1x64xf32>
    %110 = vector.broadcast %109 : vector<1x64xf32> to vector<12x64xf32>
    %111 = arith.mulf %108, %110 : vector<12x64xf32>
    %c33 = arith.constant 33 : index
    %c0_73 = arith.constant 0 : index
    %112 = vector.load %arg3[%c33, %c0_73] : memref<80x128xf32, #tpu.memory_space<vmem>>, vector<1x64xf32>
    %113 = vector.broadcast %112 : vector<1x64xf32> to vector<12x64xf32>
    %114 = arith.addf %111, %113 : vector<12x64xf32>
    %115 = arith.truncf %114 : vector<12x64xf32> to vector<12x64xbf16>
    %c416 = arith.constant 416 : index
    %c0_74 = arith.constant 0 : index
    %116 = vector.load %arg2[%c416, %c0_74] : memref<784x128xbf16, #tpu.memory_space<vmem>>, vector<24x12xbf16>
    %cst_75 = arith.constant dense<0.000000e+00> : vector<24x64xf32>
    %117 = tpu.matmul %116, %115, %cst_75 {dimension_numbers = #tpu.dot_dimension_numbers<[1], [0], [0], [1], [0, 0, 1, 1], [], []>} : vector<24x12xbf16>, vector<12x64xbf16>, vector<24x64xf32> -> vector<24x64xf32>
    %118 = arith.truncf %117 : vector<24x64xf32> to vector<24x64xbf16>
    %c448 = arith.constant 448 : index
    %c0_76 = arith.constant 0 : index
    %119 = vector.load %arg2[%c448, %c0_76] : memref<784x128xbf16, #tpu.memory_space<vmem>>, vector<64x64xbf16>
    %cst_77 = arith.constant dense<0.000000e+00> : vector<24x64xf32>
    %120 = tpu.matmul %118, %119, %cst_77 {dimension_numbers = #tpu.dot_dimension_numbers<[1], [0], [0], [1], [0, 0, 1, 1], [], []>} : vector<24x64xbf16>, vector<64x64xbf16>, vector<24x64xf32> -> vector<24x64xf32>
    %c40 = arith.constant 40 : index
    %c0_78 = arith.constant 0 : index
    %121 = vector.load %arg3[%c40, %c0_78] : memref<80x128xf32, #tpu.memory_space<vmem>>, vector<1x64xf32>
    %122 = vector.broadcast %121 : vector<1x64xf32> to vector<24x64xf32>
    %123 = arith.addf %120, %122 : vector<24x64xf32>
    %cst_79 = arith.constant 0.000000e+00 : f32
    %124 = vector.broadcast %cst_79 : f32 to vector<24x64xf32>
    %125 = arith.maximumf %123, %124 : vector<24x64xf32>
    %c41 = arith.constant 41 : index
    %c0_80 = arith.constant 0 : index
    %126 = vector.load %arg3[%c41, %c0_80] : memref<80x128xf32, #tpu.memory_space<vmem>>, vector<1x64xf32>
    %127 = vector.broadcast %126 : vector<1x64xf32> to vector<24x64xf32>
    %128 = arith.mulf %125, %127 : vector<24x64xf32>
    %c42 = arith.constant 42 : index
    %c0_81 = arith.constant 0 : index
    %129 = vector.load %arg3[%c42, %c0_81] : memref<80x128xf32, #tpu.memory_space<vmem>>, vector<1x64xf32>
    %130 = vector.broadcast %129 : vector<1x64xf32> to vector<24x64xf32>
    %131 = arith.addf %128, %130 : vector<24x64xf32>
    %c48_82 = arith.constant 48 : index
    %c0_83 = arith.constant 0 : index
    %132 = vector.load %arg3[%c48_82, %c0_83] : memref<80x128xf32, #tpu.memory_space<vmem>>, vector<24x64xf32>
    %133 = arith.mulf %131, %132 : vector<24x64xf32>
    %c512 = arith.constant 512 : index
    %c0_84 = arith.constant 0 : index
    %134 = vector.load %arg2[%c512, %c0_84] : memref<784x128xbf16, #tpu.memory_space<vmem>>, vector<12x24xbf16>
    %135 = arith.truncf %133 : vector<24x64xf32> to vector<24x64xbf16>
    %cst_85 = arith.constant dense<0.000000e+00> : vector<12x64xf32>
    %136 = tpu.matmul %134, %135, %cst_85 {dimension_numbers = #tpu.dot_dimension_numbers<[1], [0], [0], [1], [0, 0, 1, 1], [], []>} : vector<12x24xbf16>, vector<24x64xbf16>, vector<12x64xf32> -> vector<12x64xf32>
    %c528 = arith.constant 528 : index
    %c0_86 = arith.constant 0 : index
    %137 = vector.load %arg2[%c528, %c0_86] : memref<784x128xbf16, #tpu.memory_space<vmem>>, vector<64x64xbf16>
    %cst_87 = arith.constant dense<0.000000e+00> : vector<12x64xf32>
    %138 = tpu.matmul %115, %137, %cst_87 {dimension_numbers = #tpu.dot_dimension_numbers<[1], [0], [0], [1], [0, 0, 1, 1], [], []>} : vector<12x64xbf16>, vector<64x64xbf16>, vector<12x64xf32> -> vector<12x64xf32>
    %139 = arith.truncf %136 : vector<12x64xf32> to vector<12x64xbf16>
    %c592 = arith.constant 592 : index
    %c0_88 = arith.constant 0 : index
    %140 = vector.load %arg2[%c592, %c0_88] : memref<784x128xbf16, #tpu.memory_space<vmem>>, vector<64x64xbf16>
    %cst_89 = arith.constant dense<0.000000e+00> : vector<12x64xf32>
    %141 = tpu.matmul %139, %140, %cst_89 {dimension_numbers = #tpu.dot_dimension_numbers<[1], [0], [0], [1], [0, 0, 1, 1], [], []>} : vector<12x64xbf16>, vector<64x64xbf16>, vector<12x64xf32> -> vector<12x64xf32>
    %142 = arith.addf %138, %141 : vector<12x64xf32>
    %143 = arith.truncf %142 : vector<12x64xf32> to vector<12x64xbf16>
    %c656 = arith.constant 656 : index
    %c0_90 = arith.constant 0 : index
    %144 = vector.load %arg2[%c656, %c0_90] : memref<784x128xbf16, #tpu.memory_space<vmem>>, vector<64x8xbf16>
    %cst_91 = arith.constant dense<0.000000e+00> : vector<12x8xf32>
    %145 = tpu.matmul %143, %144, %cst_91 {dimension_numbers = #tpu.dot_dimension_numbers<[1], [0], [0], [1], [0, 0, 1, 1], [], []>} : vector<12x64xbf16>, vector<64x8xbf16>, vector<12x8xf32> -> vector<12x8xf32>
    %c72 = arith.constant 72 : index
    %c0_92 = arith.constant 0 : index
    %146 = vector.load %arg3[%c72, %c0_92] : memref<80x128xf32, #tpu.memory_space<vmem>>, vector<1x8xf32>
    %147 = vector.broadcast %146 : vector<1x8xf32> to vector<12x8xf32>
    %148 = arith.addf %145, %147 : vector<12x8xf32>
    %c0_93 = arith.constant 0 : index
    %c0_94 = arith.constant 0 : index
    %c0_95 = arith.constant 0 : index
    %c0_96 = arith.constant 0 : index
    %149 = vector.load %arg4[%c0_93, %c0_94, %c0_95, %c0_96] : memref<1x2x12x8xf32, #tpu.memory_space<vmem>>, vector<1x1x12x8xf32>
    %150 = vector.shape_cast %149 : vector<1x1x12x8xf32> to vector<12x8xf32>
    %151 = vector.shape_cast %148 : vector<12x8xf32> to vector<1x1x12x8xf32>
    tpu.vector_store %arg4[%c0_93, %c0_94, %c0_95, %c0_96], %151 {strides = array<i32>} : memref<1x2x12x8xf32, #tpu.memory_space<vmem>>, vector<1x1x12x8xf32>,
    %cst_97 = arith.constant 0.000000e+00 : bf16
    %152 = vector.broadcast %cst_97 : bf16 to vector<12x64xbf16>
    %153 = arith.maximumf %143, %152 : vector<12x64xbf16>
    %c720 = arith.constant 720 : index
    %c0_98 = arith.constant 0 : index
    %154 = vector.load %arg2[%c720, %c0_98] : memref<784x128xbf16, #tpu.memory_space<vmem>>, vector<64x8xbf16>
    %cst_99 = arith.constant dense<0.000000e+00> : vector<12x8xf32>
    %155 = tpu.matmul %153, %154, %cst_99 {dimension_numbers = #tpu.dot_dimension_numbers<[1], [0], [0], [1], [0, 0, 1, 1], [], []>} : vector<12x64xbf16>, vector<64x8xbf16>, vector<12x8xf32> -> vector<12x8xf32>
    %c73 = arith.constant 73 : index
    %c0_100 = arith.constant 0 : index
    %156 = vector.load %arg3[%c73, %c0_100] : memref<80x128xf32, #tpu.memory_space<vmem>>, vector<1x8xf32>
    %157 = vector.broadcast %156 : vector<1x8xf32> to vector<12x8xf32>
    %158 = arith.addf %155, %157 : vector<12x8xf32>
    %c0_101 = arith.constant 0 : index
    %c1_102 = arith.constant 1 : index
    %c0_103 = arith.constant 0 : index
    %c0_104 = arith.constant 0 : index
    %159 = vector.load %arg4[%c0_101, %c1_102, %c0_103, %c0_104] : memref<1x2x12x8xf32, #tpu.memory_space<vmem>>, vector<1x1x12x8xf32>
    %160 = vector.shape_cast %159 : vector<1x1x12x8xf32> to vector<12x8xf32>
    %161 = vector.shape_cast %158 : vector<12x8xf32> to vector<1x1x12x8xf32>
    tpu.vector_store %arg4[%c0_101, %c1_102, %c0_103, %c0_104], %161 {strides = array<i32>} : memref<1x2x12x8xf32, #tpu.memory_space<vmem>>, vector<1x1x12x8xf32>,
    return
  }
  func.func @transform_0(%arg0: i32) -> (i32, i32, i32) {
    %c0_i32 = arith.constant 0 : i32
    %c0_i32_0 = arith.constant 0 : i32
    %c0_i32_1 = arith.constant 0 : i32
    return %arg0, %c0_i32, %c0_i32_0 : i32, i32, i32
  }
  func.func @transform_1(%arg0: i32) -> (i32, i32) {
    %c0_i32 = arith.constant 0 : i32
    %c0_i32_0 = arith.constant 0 : i32
    %c0_i32_1 = arith.constant 0 : i32
    return %c0_i32, %c0_i32_0 : i32, i32
  }
  func.func @transform_2(%arg0: i32) -> (i32, i32) {
    %c0_i32 = arith.constant 0 : i32
    %c0_i32_0 = arith.constant 0 : i32
    %c0_i32_1 = arith.constant 0 : i32
    return %c0_i32, %c0_i32_0 : i32, i32
  }
  func.func @transform_3(%arg0: i32) -> (i32, i32, i32, i32) {
    %c0_i32 = arith.constant 0 : i32
    %c0_i32_0 = arith.constant 0 : i32
    %c0_i32_1 = arith.constant 0 : i32
    %c0_i32_2 = arith.constant 0 : i32
    return %arg0, %c0_i32, %c0_i32_0, %c0_i32_1 : i32, i32, i32, i32
  }
}

</mosaic_0001>

<llo_original>
// kernel: forward.1
$region0: #{forward.1}
  #allocation0 [shape = 'u32[]', space=smem, size = 0x4, offset = 0x4, fixed_abs, tag = 'smem constant byte address 0x4 - core index']
  #allocation1 [shape = 'u32[72,128]{1,0:T(1,128)}', space=vmem, size = 0x9000, scoped, tag = 'internal scratch']
  #allocation2 [shape = 'f32[64,8]{1,0:T(8,128)}', space=vmem, size = 0x8000, scoped, tag = 'scratch operand']
  #allocation3 [shape = 'f32[32,16]{1,0:T(8,128)}', space=vmem, size = 0x4000, scoped, tag = 'scratch operand']
  #allocation4 [shape = 'f32[16,32]{1,0:T(8,128)}', space=vmem, size = 0x2000, scoped, tag = 'scratch operand']
  %s0 = inlined_call_operand.vmem [shape: f32[2,126,1], index: 0, kind: input, shape index: {}]
  %s1 = inlined_call_operand.hbm [shape: bf16[784,128], index: 1, kind: input, shape index: {}]
  %s2 = inlined_call_operand.vmem [shape: f32[80,128], index: 2, kind: input, shape index: {}]
  %s3 = inlined_call_operand.vmem [shape: f32[2,2,12,8], index: 3, kind: output, shape index: {}]
  %s4 = sld [smem:[#allocation0]]
  $region49: #{forward.1} parent=0
    _
  %s6 = ssub.s32 1, %s4
  %s7 = scalar_select 0, %s6, %s4
  $region1: #{forward.1} parent=0
    #allocation5 [shape = 'u8[200704]{0}', space=vmem, size = 0x31000, scoped, tag = 'input window, operand 1, single buffered']
    #allocation6 [shape = 's32[2]{0}', space=sflag, size = 0x8, scoped, tag = 'scoped memory for forward.1']
    %8 = vsyncpa [#allocation6], 0
    loop: start=0, step=1, limit=4
    $region2: #{forward.1} parent=1 // loop_pre_header
      _
    $region3: #{forward.1} parent=1 // loop_header
      %s10 = sphi 0, %s14
      %p11 = scmp.ge.s32.totalorder %s10, 4
      %s20 = sphi 0, %s22
      %s23 = sphi 0, %s20
      %s24 = sphi 0, %s23
      %s40 = sphi 0, %s24
      %s44 = sphi 0, %s44
      %s46 = sphi 0, %s44
      %s47 = sphi 0, %s46
      %s61 = sphi 0, %s47
      %s65 = sphi 0, %s65
      %s67 = sphi 0, %s65
      %s68 = sphi 0, %s67
      %s82 = sphi 0, %s68
      %s88 = sphi 0, %s90
      %s91 = sphi 0, %s88
      %s92 = sphi 0, %s91
      %s108 = sphi 0, %s92
    $region4: #{forward.1} parent=1 // loop_header_branch
      %13 = sbr.rel (%p11) target = $region8
    $region5: #{forward.1} parent=1 // loop_body
      %s15 = ssub.s32 %s10, 1
      %s16 = ssub.s32 %s10, 2
      %s17 = sadd.s32 %s10, 1
      %s18 = ssub.s32 %s10, %s17
      %p19 = scmp.eq.s32.totalorder %s18, 0
      %s21 = sadd.s32 %s20, 1
      %s22 = scalar_select %p19, %s20, %s21
      %p25 = pneg %p19
      %p26 = scmp.eq.s32.totalorder %s10, 1
      %p27 = por %p25, %p26
      %p28 = scmp.ne.s32.totalorder %s20, %s23
      %p29 = scmp.eq.s32.totalorder %s10, 0
      %p30 = por %p28, %p29
      %p31 = scmp.ne.s32.totalorder %s20, %s23
      %p32 = scmp.eq.s32.totalorder %s15, 1
      %p33 = por %p31, %p32
      %p34 = scmp.ne.s32.totalorder %s23, %s24
      %p35 = scmp.eq.s32.totalorder %s15, 0
      %p36 = por %p34, %p35
      %p37 = scmp.ne.s32.totalorder %s23, %s24
      %p38 = scmp.eq.s32.totalorder %s16, 1
      %p39 = por %p37, %p38
      %p41 = scmp.ne.s32.totalorder %s24, %s40
      %p42 = scmp.eq.s32.totalorder %s16, 0
      %p43 = por %p41, %p42
      %s45 = sadd.s32 %s44, 1
      %p48 = scmp.eq.s32.totalorder %s10, 1
      %p49 = scmp.ne.s32.totalorder %s44, %s46
      %p50 = scmp.eq.s32.totalorder %s10, 0
      %p51 = por %p49, %p50
      %p52 = scmp.ne.s32.totalorder %s44, %s46
      %p53 = scmp.eq.s32.totalorder %s15, 1
      %p54 = por %p52, %p53
      %p55 = scmp.ne.s32.totalorder %s46, %s47
      %p56 = scmp.eq.s32.totalorder %s15, 0
      %p57 = por %p55, %p56
      %p58 = scmp.ne.s32.totalorder %s46, %s47
      %p59 = scmp.eq.s32.totalorder %s16, 1
      %p60 = por %p58, %p59
      %p62 = scmp.ne.s32.totalorder %s47, %s61
      %p63 = scmp.eq.s32.totalorder %s16, 0
      %p64 = por %p62, %p63
      %s66 = sadd.s32 %s65, 1
      %p69 = scmp.eq.s32.totalorder %s10, 1
      %p70 = scmp.ne.s32.totalorder %s65, %s67
      %p71 = scmp.eq.s32.totalorder %s10, 0
      %p72 = por %p70, %p71
      %p73 = scmp.ne.s32.totalorder %s65, %s67
      %p74 = scmp.eq.s32.totalorder %s15, 1
      %p75 = por %p73, %p74
      %p76 = scmp.ne.s32.totalorder %s67, %s68
      %p77 = scmp.eq.s32.totalorder %s15, 0
      %p78 = por %p76, %p77
      %p79 = scmp.ne.s32.totalorder %s67, %s68
      %p80 = scmp.eq.s32.totalorder %s16, 1
      %p81 = por %p79, %p80
      %p83 = scmp.ne.s32.totalorder %s68, %s82
      %p84 = scmp.eq.s32.totalorder %s16, 0
      %p85 = por %p83, %p84
      %s86 = ssub.s32 %s10, %s17
      %p87 = scmp.eq.s32.totalorder %s86, 0
      %s89 = sadd.s32 %s88, 1
      %s90 = scalar_select %p87, %s88, %s89
      %p93 = pneg %p87
      %p94 = scmp.eq.s32.totalorder %s10, 1
      %p95 = por %p93, %p94
      %p96 = scmp.ne.s32.totalorder %s88, %s91
      %p97 = scmp.eq.s32.totalorder %s10, 0
      %p98 = por %p96, %p97
      %p99 = scmp.ne.s32.totalorder %s88, %s91
      %p100 = scmp.eq.s32.totalorder %s15, 1
      %p101 = por %p99, %p100
      %p102 = scmp.ne.s32.totalorder %s91, %s92
      %p103 = scmp.eq.s32.totalorder %s15, 0
      %p104 = por %p102, %p103
      %p105 = scmp.ne.s32.totalorder %s91, %s92
      %p106 = scmp.eq.s32.totalorder %s16, 1
      %p107 = por %p105, %p106
      %p109 = scmp.ne.s32.totalorder %s92, %s108
      %p110 = scmp.eq.s32.totalorder %s16, 0
      %p111 = por %p109, %p110
      %p112 = scmp.le.s32.totalorder 1, %s10
      %p113 = scmp.lt.s32.totalorder %s10, 3
      %p114 = pnand %p112, %p113
      %p115 = pneg %p114
      // Predicated region
      $region9: #{forward.1} parent=5 // pred_check
        _
      $region10: #{forward.1} parent=5 // pred_check_branch
        %117 = sbr.rel (%p114) target = $region12
      $region11: #{forward.1} parent=5 // pred_region
        %s118 = ssub.s32 %s10, 1
        // Predicated region
        $region13: #{forward.1} parent=11 // pred_check
          %p119 = pneg %p57
        $region14: #{forward.1} parent=11 // pred_check_branch
          %121 = sbr.rel (%p119) target = $region16
        $region15: #{forward.1} parent=11 // pred_region
          %123 = vsyncadd [#allocation6], 0
          %s124 = sshll.u32 %s1, 4
          %s125 = int_to_ptr.hbm [resolvable:$true] %s124
          %s126 = sshll.u32 [#allocation5], 4
          %s127 = int_to_ptr.vmem [resolvable:$true] %s126
          %132 = dma.hbm_to_vmem [thread:$0]  %s125, 6272, %s127, [#allocation6], 64, 64, 4
        $region16: #{forward.1} parent=11 // pred_fallthru
          _
        // Predicated region
        $region17: #{forward.1} parent=11 // pred_check
          %p133 = pneg %p78
        $region18: #{forward.1} parent=11 // pred_check_branch
          %135 = sbr.rel (%p133) target = $region20
        $region19: #{forward.1} parent=11 // pred_region
          _
        $region20: #{forward.1} parent=11 // pred_fallthru
          _
      $region12: #{forward.1} parent=5 // pred_fallthru
        _
      %p136 = scmp.lt.s32.totalorder %s10, 2
      // Predicated region
      $region21: #{forward.1} parent=5 // pred_check
        %p137 = pneg %p136
      $region22: #{forward.1} parent=5 // pred_check_branch
        %139 = sbr.rel (%p137) target = $region24
      $region23: #{forward.1} parent=5 // pred_region
        // Predicated region
        $region25: #{forward.1} parent=23 // pred_check
          %p140 = pneg %p30
        $region26: #{forward.1} parent=23 // pred_check_branch
          %142 = sbr.rel (%p140) target = $region28
        $region27: #{forward.1} parent=23 // pred_region
          %p143 = scmp.lt.s32.totalorder %s10, 1
          %s144 = scalar_select %p143, %s10, 1
          %s145 = smul.addr %s144, 16
          %s146 = smul.addr %s145, 8
          %s147 = scalar_lea.vmem %s0, %s146
        $region28: #{forward.1} parent=23 // pred_fallthru
          _
      $region24: #{forward.1} parent=5 // pred_fallthru
        _
      %p148 = scmp.le.s32.totalorder 1, %s10
      %p149 = scmp.lt.s32.totalorder %s10, 3
      %p150 = pnand %p148, %p149
      %p151 = pneg %p150
      // Predicated region
      $region29: #{forward.1} parent=5 // pred_check
        _
      $region30: #{forward.1} parent=5 // pred_check_branch
        %153 = sbr.rel (%p150) target = $region32
      $region31: #{forward.1} parent=5 // pred_region
        %s154 = ssub.s32 %s10, 1
        // Predicated region
        $region33: #{forward.1} parent=31 // pred_check
          %p155 = pneg %p57
        $region34: #{forward.1} parent=31 // pred_check_branch
          %157 = sbr.rel (%p155) target = $region36
        $region35: #{forward.1} parent=31 // pred_region
          %159 = dma.done [#allocation6], 6272
        $region36: #{forward.1} parent=31 // pred_fallthru
          _
        %p160 = scmp.lt.s32.totalorder %s15, 1
        %s161 = scalar_select %p160, %s15, 1
        %s162 = smul.addr %s161, 16
        %s163 = smul.addr %s162, 8
        %s164 = scalar_lea.vmem %s0, %s163
        %p165 = pneg %p36
        %p166 = pneg %p33
        %p167 = pneg %p57
        %p168 = pneg %p54
        %p169 = pneg %p78
        %p170 = pneg %p75
        %p171 = pneg %p104
        %p172 = pneg %p101
        %p173 = scmp.lt.s32.totalorder %s15, 1
        %s174 = scalar_select %p173, %s15, 1
        %s175 = smul.addr %s174, 4
        %s176 = smul.addr %s175, 8
        %s177 = scalar_lea.vmem %s3, %s176
        %p178 = scmp.lt.s32.totalorder %s15, 1
        %s179 = scalar_select %p178, %s15, 1
        %s180 = smul.addr %s179, 16
        %s181 = smul.addr %s180, 8
        %s182 = scalar_lea.vmem %s0, %s181
        %p183 = scmp.lt.s32.totalorder %s15, 1
        %s184 = scalar_select %p183, %s15, 1
        %s185 = smul.addr %s184, 4
        %s186 = smul.addr %s185, 8
        %s187 = scalar_lea.vmem %s3, %s186
        %v189 = vld [vmem:[%s182] sm:$0xff]
        %v190 = vld [vmem:[%s182 + $0x8] sm:$0xff]
        %v191 = vld [vmem:[%s182 + $0x10] sm:$0xff]
        %v192 = vld [vmem:[%s182 + $0x18] sm:$0xff]
        %v193 = vld [vmem:[%s182 + $0x20] sm:$0xff]
        %v194 = vld [vmem:[%s182 + $0x28] sm:$0xff]
        %v195 = vld [vmem:[%s182 + $0x30] sm:$0xff]
        %v196 = vld [vmem:[%s182 + $0x38] sm:$0xff]
        %v197 = vld [vmem:[%s182 + $0x40] sm:$0xff]
        %v198 = vld [vmem:[%s182 + $0x48] sm:$0xff]
        %v199 = vld [vmem:[%s182 + $0x50] sm:$0xff]
        %v200 = vld [vmem:[%s182 + $0x58] sm:$0xff]
        %v201 = vld [vmem:[%s182 + $0x60] sm:$0xff]
        %v202 = vld [vmem:[%s182 + $0x68] sm:$0xff]
        %v203 = vld [vmem:[%s182 + $0x70] sm:$0xff]
        %v204 = vld [vmem:[%s182 + $0x78] sm:$0xf]
        %v205 = vld [vmem:[%s2] sm:$0x1]
        %207 = vset.pattern.permute.xlu0 0
        %208 = vperm.xlu0 %207, %v189
        %v209 = vpop.permute.xlu0 %208
        %212 = vset.pattern.permute.xlu0 0
        %213 = vperm.xlu0 %212, %v190
        %v214 = vpop.permute.xlu0 %213
        %217 = vset.pattern.permute.xlu0 0
        %218 = vperm.xlu0 %217, %v191
        %v219 = vpop.permute.xlu0 %218
        %222 = vset.pattern.permute.xlu0 0
        %223 = vperm.xlu0 %222, %v192
        %v224 = vpop.permute.xlu0 %223
        %227 = vset.pattern.permute.xlu0 0
        %228 = vperm.xlu0 %227, %v193
        %v229 = vpop.permute.xlu0 %228
        %232 = vset.pattern.permute.xlu0 0
        %233 = vperm.xlu0 %232, %v194
        %v234 = vpop.permute.xlu0 %233
        %237 = vset.pattern.permute.xlu0 0
        %238 = vperm.xlu0 %237, %v195
        %v239 = vpop.permute.xlu0 %238
        %242 = vset.pattern.permute.xlu0 0
        %243 = vperm.xlu0 %242, %v196
        %v244 = vpop.permute.xlu0 %243
        %247 = vset.pattern.permute.xlu0 0
        %248 = vperm.xlu0 %247, %v197
        %v249 = vpop.permute.xlu0 %248
        %252 = vset.pattern.permute.xlu0 0
        %253 = vperm.xlu0 %252, %v198
        %v254 = vpop.permute.xlu0 %253
        %257 = vset.pattern.permute.xlu0 0
        %258 = vperm.xlu0 %257, %v199
        %v259 = vpop.permute.xlu0 %258
        %262 = vset.pattern.permute.xlu0 0
        %263 = vperm.xlu0 %262, %v200
        %v264 = vpop.permute.xlu0 %263
        %267 = vset.pattern.permute.xlu0 0
        %268 = vperm.xlu0 %267, %v201
        %v269 = vpop.permute.xlu0 %268
        %272 = vset.pattern.permute.xlu0 0
        %273 = vperm.xlu0 %272, %v202
        %v274 = vpop.permute.xlu0 %273
        %277 = vset.pattern.permute.xlu0 0
        %278 = vperm.xlu0 %277, %v203
        %v279 = vpop.permute.xlu0 %278
        %282 = vset.pattern.permute.xlu0 0
        %283 = vperm.xlu0 %282, %v204
        %v284 = vpop.permute.xlu0 %283
        %v286 = vperm.slane %v205, 0
        %v287 = vmul.f32 %v209, %v286
        %v288 = vmul.f32 %v214, %v286
        %v289 = vmul.f32 %v219, %v286
        %v290 = vmul.f32 %v224, %v286
        %v291 = vmul.f32 %v229, %v286
        %v292 = vmul.f32 %v234, %v286
        %v293 = vmul.f32 %v239, %v286
        %v294 = vmul.f32 %v244, %v286
        %v295 = vmul.f32 %v249, %v286
        %v296 = vmul.f32 %v254, %v286
        %v297 = vmul.f32 %v259, %v286
        %v298 = vmul.f32 %v264, %v286
        %v299 = vmul.f32 %v269, %v286
        %v300 = vmul.f32 %v274, %v286
        %v301 = vmul.f32 %v279, %v286
        %v302 = vmul.f32 %v284, %v286
        %v303 = vld [vmem:[%s182 + $0x1] sm:$0xff]
        %v304 = vld [vmem:[%s182 + $0x9] sm:$0xff]
        %v305 = vld [vmem:[%s182 + $0x11] sm:$0xff]
        %v306 = vld [vmem:[%s182 + $0x19] sm:$0xff]
        %v307 = vld [vmem:[%s182 + $0x21] sm:$0xff]
        %v308 = vld [vmem:[%s182 + $0x29] sm:$0xff]
        %v309 = vld [vmem:[%s182 + $0x31] sm:$0xff]
        %v310 = vld [vmem:[%s182 + $0x39] sm:$0xff]
        %v311 = vld [vmem:[%s182 + $0x41] sm:$0xff]
        %v312 = vld [vmem:[%s182 + $0x49] sm:$0xff]
        %v313 = vld [vmem:[%s182 + $0x51] sm:$0xff]
        %v314 = vld [vmem:[%s182 + $0x59] sm:$0xff]
        %v315 = vld [vmem:[%s182 + $0x61] sm:$0xff]
        %v316 = vld [vmem:[%s182 + $0x69] sm:$0xff]
        %v317 = vld [vmem:[%s182 + $0x71] sm:$0xff]
        %v318 = vld [vmem:[%s182 + $0x79] sm:$0xf]
        %v319 = vld [vmem:[%s2 + $0x1] sm:$0x1]
        %321 = vset.pattern.permute.xlu0 0
        %322 = vperm.xlu0 %321, %v303
        %v323 = vpop.permute.xlu0 %322
        %326 = vset.pattern.permute.xlu0 0
        %327 = vperm.xlu0 %326, %v304
        %v328 = vpop.permute.xlu0 %327
        %331 = vset.pattern.permute.xlu0 0
        %332 = vperm.xlu0 %331, %v305
        %v333 = vpop.permute.xlu0 %332
        %336 = vset.pattern.permute.xlu0 0
        %337 = vperm.xlu0 %336, %v306
        %v338 = vpop.permute.xlu0 %337
        %341 = vset.pattern.permute.xlu0 0
        %342 = vperm.xlu0 %341, %v307
        %v343 = vpop.permute.xlu0 %342
        %346 = vset.pattern.permute.xlu0 0
        %347 = vperm.xlu0 %346, %v308
        %v348 = vpop.permute.xlu0 %347
        %351 = vset.pattern.permute.xlu0 0
        %352 = vperm.xlu0 %351, %v309
        %v353 = vpop.permute.xlu0 %352
        %356 = vset.pattern.permute.xlu0 0
        %357 = vperm.xlu0 %356, %v310
        %v358 = vpop.permute.xlu0 %357
        %361 = vset.pattern.permute.xlu0 0
        %362 = vperm.xlu0 %361, %v311
        %v363 = vpop.permute.xlu0 %362
        %366 = vset.pattern.permute.xlu0 0
        %367 = vperm.xlu0 %366, %v312
        %v368 = vpop.permute.xlu0 %367
        %371 = vset.pattern.permute.xlu0 0
        %372 = vperm.xlu0 %371, %v313
        %v373 = vpop.permute.xlu0 %372
        %376 = vset.pattern.permute.xlu0 0
        %377 = vperm.xlu0 %376, %v314
        %v378 = vpop.permute.xlu0 %377
        %381 = vset.pattern.permute.xlu0 0
        %382 = vperm.xlu0 %381, %v315
        %v383 = vpop.permute.xlu0 %382
        %386 = vset.pattern.permute.xlu0 0
        %387 = vperm.xlu0 %386, %v316
        %v388 = vpop.permute.xlu0 %387
        %391 = vset.pattern.permute.xlu0 0
        %392 = vperm.xlu0 %391, %v317
        %v393 = vpop.permute.xlu0 %392
        %396 = vset.pattern.permute.xlu0 0
        %397 = vperm.xlu0 %396, %v318
        %v398 = vpop.permute.xlu0 %397
        %v400 = vperm.slane %v319, 0
        %v401 = vmul.f32 %v323, %v400
        %v402 = vmul.f32 %v328, %v400
        %v403 = vmul.f32 %v333, %v400
        %v404 = vmul.f32 %v338, %v400
        %v405 = vmul.f32 %v343, %v400
        %v406 = vmul.f32 %v348, %v400
        %v407 = vmul.f32 %v353, %v400
        %v408 = vmul.f32 %v358, %v400
        %v409 = vmul.f32 %v363, %v400
        %v410 = vmul.f32 %v368, %v400
        %v411 = vmul.f32 %v373, %v400
        %v412 = vmul.f32 %v378, %v400
        %v413 = vmul.f32 %v383, %v400
        %v414 = vmul.f32 %v388, %v400
        %v415 = vmul.f32 %v393, %v400
        %v416 = vmul.f32 %v398, %v400
        %v417 = vadd.f32 %v287, %v401
        %v418 = vadd.f32 %v288, %v402
        %v419 = vadd.f32 %v289, %v403
        %v420 = vadd.f32 %v290, %v404
        %v421 = vadd.f32 %v291, %v405
        %v422 = vadd.f32 %v292, %v406
        %v423 = vadd.f32 %v293, %v407
        %v424 = vadd.f32 %v294, %v408
        %v425 = vadd.f32 %v295, %v409
        %v426 = vadd.f32 %v296, %v410
        %v427 = vadd.f32 %v297, %v411
        %v428 = vadd.f32 %v298, %v412
        %v429 = vadd.f32 %v299, %v413
        %v430 = vadd.f32 %v300, %v414
        %v431 = vadd.f32 %v301, %v415
        %v432 = vadd.f32 %v302, %v416
        %v433 = vld [vmem:[%s182 + $0x2] sm:$0xff]
        %v434 = vld [vmem:[%s182 + $0xa] sm:$0xff]
        %v435 = vld [vmem:[%s182 + $0x12] sm:$0xff]
        %v436 = vld [vmem:[%s182 + $0x1a] sm:$0xff]
        %v437 = vld [vmem:[%s182 + $0x22] sm:$0xff]
        %v438 = vld [vmem:[%s182 + $0x2a] sm:$0xff]
        %v439 = vld [vmem:[%s182 + $0x32] sm:$0xff]
        %v440 = vld [vmem:[%s182 + $0x3a] sm:$0xff]
        %v441 = vld [vmem:[%s182 + $0x42] sm:$0xff]
        %v442 = vld [vmem:[%s182 + $0x4a] sm:$0xff]
        %v443 = vld [vmem:[%s182 + $0x52] sm:$0xff]
        %v444 = vld [vmem:[%s182 + $0x5a] sm:$0xff]
        %v445 = vld [vmem:[%s182 + $0x62] sm:$0xff]
        %v446 = vld [vmem:[%s182 + $0x6a] sm:$0xff]
        %v447 = vld [vmem:[%s182 + $0x72] sm:$0xff]
        %v448 = vld [vmem:[%s182 + $0x7a] sm:$0xf]
        %v449 = vld [vmem:[%s2 + $0x2] sm:$0x1]
        %451 = vset.pattern.permute.xlu0 0
        %452 = vperm.xlu0 %451, %v433
        %v453 = vpop.permute.xlu0 %452
        %456 = vset.pattern.permute.xlu0 0
        %457 = vperm.xlu0 %456, %v434
        %v458 = vpop.permute.xlu0 %457
        %461 = vset.pattern.permute.xlu0 0
        %462 = vperm.xlu0 %461, %v435
        %v463 = vpop.permute.xlu0 %462
        %466 = vset.pattern.permute.xlu0 0
        %467 = vperm.xlu0 %466, %v436
        %v468 = vpop.permute.xlu0 %467
        %471 = vset.pattern.permute.xlu0 0
        %472 = vperm.xlu0 %471, %v437
        %v473 = vpop.permute.xlu0 %472
        %476 = vset.pattern.permute.xlu0 0
        %477 = vperm.xlu0 %476, %v438
        %v478 = vpop.permute.xlu0 %477
        %481 = vset.pattern.permute.xlu0 0
        %482 = vperm.xlu0 %481, %v439
        %v483 = vpop.permute.xlu0 %482
        %486 = vset.pattern.permute.xlu0 0
        %487 = vperm.xlu0 %486, %v440
        %v488 = vpop.permute.xlu0 %487
        %491 = vset.pattern.permute.xlu0 0
        %492 = vperm.xlu0 %491, %v441
        %v493 = vpop.permute.xlu0 %492
        %496 = vset.pattern.permute.xlu0 0
        %497 = vperm.xlu0 %496, %v442
        %v498 = vpop.permute.xlu0 %497
        %501 = vset.pattern.permute.xlu0 0
        %502 = vperm.xlu0 %501, %v443
        %v503 = vpop.permute.xlu0 %502
        %506 = vset.pattern.permute.xlu0 0
        %507 = vperm.xlu0 %506, %v444
        %v508 = vpop.permute.xlu0 %507
        %511 = vset.pattern.permute.xlu0 0
        %512 = vperm.xlu0 %511, %v445
        %v513 = vpop.permute.xlu0 %512
        %516 = vset.pattern.permute.xlu0 0
        %517 = vperm.xlu0 %516, %v446
        %v518 = vpop.permute.xlu0 %517
        %521 = vset.pattern.permute.xlu0 0
        %522 = vperm.xlu0 %521, %v447
        %v523 = vpop.permute.xlu0 %522
        %526 = vset.pattern.permute.xlu0 0
        %527 = vperm.xlu0 %526, %v448
        %v528 = vpop.permute.xlu0 %527
        %v530 = vperm.slane %v449, 0
        %v531 = vmul.f32 %v453, %v530
        %v532 = vmul.f32 %v458, %v530
        %v533 = vmul.f32 %v463, %v530
        %v534 = vmul.f32 %v468, %v530
        %v535 = vmul.f32 %v473, %v530
        %v536 = vmul.f32 %v478, %v530
        %v537 = vmul.f32 %v483, %v530
        %v538 = vmul.f32 %v488, %v530
        %v539 = vmul.f32 %v493, %v530
        %v540 = vmul.f32 %v498, %v530
        %v541 = vmul.f32 %v503, %v530
        %v542 = vmul.f32 %v508, %v530
        %v543 = vmul.f32 %v513, %v530
        %v544 = vmul.f32 %v518, %v530
        %v545 = vmul.f32 %v523, %v530
        %v546 = vmul.f32 %v528, %v530
        %v547 = vadd.f32 %v417, %v531
        %v548 = vadd.f32 %v418, %v532
        %v549 = vadd.f32 %v419, %v533
        %v550 = vadd.f32 %v420, %v534
        %v551 = vadd.f32 %v421, %v535
        %v552 = vadd.f32 %v422, %v536
        %v553 = vadd.f32 %v423, %v537
        %v554 = vadd.f32 %v424, %v538
        %v555 = vadd.f32 %v425, %v539
        %v556 = vadd.f32 %v426, %v540
        %v557 = vadd.f32 %v427, %v541
        %v558 = vadd.f32 %v428, %v542
        %v559 = vadd.f32 %v429, %v543
        %v560 = vadd.f32 %v430, %v544
        %v561 = vadd.f32 %v431, %v545
        %v562 = vadd.f32 %v432, %v546
        %v563 = vmax.f32 %v547, 0.0
        %v564 = vmax.f32 %v548, 0.0
        %v565 = vmax.f32 %v549, 0.0
        %v566 = vmax.f32 %v550, 0.0
        %v567 = vmax.f32 %v551, 0.0
        %v568 = vmax.f32 %v552, 0.0
        %v569 = vmax.f32 %v553, 0.0
        %v570 = vmax.f32 %v554, 0.0
        %v571 = vmax.f32 %v555, 0.0
        %v572 = vmax.f32 %v556, 0.0
        %v573 = vmax.f32 %v557, 0.0
        %v574 = vmax.f32 %v558, 0.0
        %v575 = vmax.f32 %v559, 0.0
        %v576 = vmax.f32 %v560, 0.0
        %v577 = vmax.f32 %v561, 0.0
        %v578 = vmax.f32 %v562, 0.0
        %v579 = vld [vmem:[%s2 + $0x8] sm:$0x1]
        %v580 = vperm.slane %v579, 0
        %v581 = vmul.f32 %v563, %v580
        %v582 = vmul.f32 %v564, %v580
        %v583 = vmul.f32 %v565, %v580
        %v584 = vmul.f32 %v566, %v580
        %v585 = vmul.f32 %v567, %v580
        %v586 = vmul.f32 %v568, %v580
        %v587 = vmul.f32 %v569, %v580
        %v588 = vmul.f32 %v570, %v580
        %v589 = vmul.f32 %v571, %v580
        %v590 = vmul.f32 %v572, %v580
        %v591 = vmul.f32 %v573, %v580
        %v592 = vmul.f32 %v574, %v580
        %v593 = vmul.f32 %v575, %v580
        %v594 = vmul.f32 %v576, %v580
        %v595 = vmul.f32 %v577, %v580
        %v596 = vmul.f32 %v578, %v580
        %v597 = vld [vmem:[%s2 + $0x9] sm:$0x1]
        %v598 = vperm.slane %v597, 0
        %v599 = vadd.f32 %v581, %v598
        %v600 = vadd.f32 %v582, %v598
        %v601 = vadd.f32 %v583, %v598
        %v602 = vadd.f32 %v584, %v598
        %v603 = vadd.f32 %v585, %v598
        %v604 = vadd.f32 %v586, %v598
        %v605 = vadd.f32 %v587, %v598
        %v606 = vadd.f32 %v588, %v598
        %v607 = vadd.f32 %v589, %v598
        %v608 = vadd.f32 %v590, %v598
        %v609 = vadd.f32 %v591, %v598
        %v610 = vadd.f32 %v592, %v598
        %v611 = vadd.f32 %v593, %v598
        %v612 = vadd.f32 %v594, %v598
        %v613 = vadd.f32 %v595, %v598
        %v614 = vadd.f32 %v596, %v598
        %v615 = vld [vmem:[#allocation5 + $0x60] sm:$0xf]
        %v616 = vld [vmem:[#allocation5 + $0x64] sm:$0xf]
        %v617 = vld [vmem:[#allocation5 + $0x68] sm:$0xf]
        %v618 = vld [vmem:[#allocation5 + $0x6c] sm:$0xf]
        %v619 = vld [vmem:[#allocation5 + $0x70] sm:$0xf]
        %v620 = vld [vmem:[#allocation5 + $0x74] sm:$0xf]
        %v621 = vld [vmem:[#allocation5 + $0x78] sm:$0xf]
        %v622 = vld [vmem:[#allocation5 + $0x7c] sm:$0xf]
        %v623 = vld [vmem:[#allocation5 + $0x80] sm:$0xf]
        %v624 = vld [vmem:[#allocation5 + $0x84] sm:$0xf]
        %v625 = vld [vmem:[#allocation5 + $0x88] sm:$0xf]
        %v626 = vld [vmem:[#allocation5 + $0x8c] sm:$0xf]
        %v627 = vld [vmem:[#allocation5 + $0x90] sm:$0xf]
        %v628 = vld [vmem:[#allocation5 + $0x94] sm:$0xf]
        %v629 = vld [vmem:[#allocation5 + $0x98] sm:$0xf]
        %v630 = vld [vmem:[#allocation5 + $0x9c] sm:$0xf]
        %v631 = vpack.c.bf16 %v600, %v599
        %v632 = vpack.c.bf16 %v602, %v601
        %v633 = vpack.c.bf16 %v604, %v603
        %v634 = vpack.c.bf16 %v606, %v605
        %v635 = vpack.c.bf16 %v608, %v607
        %v636 = vpack.c.bf16 %v610, %v609
        %v637 = vpack.c.bf16 %v612, %v611
        %v638 = vpack.c.bf16 %v614, %v613
        %v655 = vunpack.c.l.b16 %v615
        %v656 = vunpack.c.l.b16 %v616
        %v657 = vunpack.c.l.b16 %v617
        %v658 = vunpack.c.l.b16 %v618
        %v659 = vunpack.c.l.b16 %v619
        %v660 = vunpack.c.l.b16 %v620
        %v661 = vunpack.c.l.b16 %v621
        %v662 = vunpack.c.l.b16 %v622
        %v663 = vunpack.c.l.b16 %v623
        %v664 = vunpack.c.l.b16 %v624
        %v665 = vunpack.c.l.b16 %v625
        %v666 = vunpack.c.l.b16 %v626
        %v667 = vunpack.c.l.b16 %v627
        %v668 = vunpack.c.l.b16 %v628
        %v669 = vunpack.c.l.b16 %v629
        %v670 = vunpack.c.l.b16 %v630
        %v671 = vpack.c.b16 %v656, %v655
        %v672 = vpack.c.b16 %v658, %v657
        %v673 = vpack.c.b16 %v660, %v659
        %v674 = vpack.c.b16 %v662, %v661
        %v675 = vpack.c.b16 %v664, %v663
        %v676 = vpack.c.b16 %v666, %v665
        %v677 = vpack.c.b16 %v668, %v667
        %v678 = vpack.c.b16 %v670, %v669
        %vm679 = vcmask 1014784
        %v681 = vsel %vm679, %v671, 0
        %v684 = vsel %vm679, %v672, 0
        %v687 = vsel %vm679, %v673, 0
        %v690 = vsel %vm679, %v674, 0
        %v693 = vsel %vm679, %v675, 0
        %v696 = vsel %vm679, %v676, 0
        %v699 = vsel %vm679, %v677, 0
        %v702 = vsel %vm679, %v678, 0
        %vm704 = vcmask 1045504
        %v706 = vsel %vm704, %v638, 0
        %708 = vmatpush.bf16.msra.mxu0 %v706
        %709 = vmatpush.bf16.msra.mxu0 %v637
        %710 = vmatpush.bf16.msra.mxu0 %v636
        %711 = vmatpush.bf16.msra.mxu0 %v635
        %712 = vmatpush.bf16.msra.mxu0 %v634
        %713 = vmatpush.bf16.msra.mxu0 %v633
        %714 = vmatpush.bf16.msra.mxu0 %v632
        %715 = vmatpush.bf16.msra.mxu0 %v631
        %716 = vmatmul.bf16.gmra.mxu0 %v681
        %v717 = vpop.f32.mrf.mxu0
        %v718 = vadd.f32 0.0, %v717
        %v719 = vpop.f32.mrf.mxu0
        %v720 = vadd.f32 0.0, %v719
        %721 = vmatmul.bf16.gmra.mxu0 %v684
        %v722 = vpop.f32.mrf.mxu0
        %v723 = vadd.f32 0.0, %v722
        %v724 = vpop.f32.mrf.mxu0
        %v725 = vadd.f32 0.0, %v724
        %726 = vmatmul.bf16.gmra.mxu0 %v687
        %v727 = vpop.f32.mrf.mxu0
        %v728 = vadd.f32 0.0, %v727
        %v729 = vpop.f32.mrf.mxu0
        %v730 = vadd.f32 0.0, %v729
        %731 = vmatmul.bf16.gmra.mxu0 %v690
        %v732 = vpop.f32.mrf.mxu0
        %v733 = vadd.f32 0.0, %v732
        %v734 = vpop.f32.mrf.mxu0
        %v735 = vadd.f32 0.0, %v734
        %736 = vmatmul.bf16.gmra.mxu0 %v693
        %v737 = vpop.f32.mrf.mxu0
        %v738 = vadd.f32 0.0, %v737
        %v739 = vpop.f32.mrf.mxu0
        %v740 = vadd.f32 0.0, %v739
        %741 = vmatmul.bf16.gmra.mxu0 %v696
        %v742 = vpop.f32.mrf.mxu0
        %v743 = vadd.f32 0.0, %v742
        %v744 = vpop.f32.mrf.mxu0
        %v745 = vadd.f32 0.0, %v744
        %746 = vmatmul.bf16.gmra.mxu0 %v699
        %v747 = vpop.f32.mrf.mxu0
        %v748 = vadd.f32 0.0, %v747
        %v749 = vpop.f32.mrf.mxu0
        %v750 = vadd.f32 0.0, %v749
        %751 = vmatmul.bf16.gmra.mxu0 %v702
        %v752 = vpop.f32.mrf.mxu0
        %v753 = vadd.f32 0.0, %v752
        %v754 = vpop.f32.mrf.mxu0
        %v755 = vadd.f32 0.0, %v754
        %756 = vdwg.mxu0
        %v757 = vmax.f32 %v718, %v738
        %v758 = vmax.f32 %v720, %v740
        %v759 = vmax.f32 %v723, %v743
        %v760 = vmax.f32 %v725, %v745
        %v761 = vmax.f32 %v728, %v748
        %v762 = vmax.f32 %v730, %v750
        %v763 = vmax.f32 %v733, %v753
        %v764 = vmax.f32 %v735, %v755
        %vm765 = vcmask 64512
        %766 = vst.msk [vmem:[#allocation2] sm:$0xff] %vm765, %v757
        %767 = vst.msk [vmem:[#allocation2 + $0x8] sm:$0xff] %vm765, %v758
        %768 = vst.msk [vmem:[#allocation2 + $0x10] sm:$0xff] %vm765, %v759
        %769 = vst.msk [vmem:[#allocation2 + $0x18] sm:$0xff] %vm765, %v760
        %770 = vst.msk [vmem:[#allocation2 + $0x20] sm:$0xff] %vm765, %v761
        %771 = vst.msk [vmem:[#allocation2 + $0x28] sm:$0xff] %vm765, %v762
        %772 = vst.msk [vmem:[#allocation2 + $0x30] sm:$0xff] %vm765, %v763
        %773 = vst.msk [vmem:[#allocation2 + $0x38] sm:$0xff] %vm765, %v764
        %v774 = vld [vmem:[#allocation2] sm:$0xff]
        %v775 = vld [vmem:[#allocation2 + $0x8] sm:$0xff]
        %v776 = vld [vmem:[#allocation2 + $0x10] sm:$0xff]
        %v777 = vld [vmem:[#allocation2 + $0x18] sm:$0xff]
        %v778 = vld [vmem:[#allocation2 + $0x20] sm:$0xff]
        %v779 = vld [vmem:[#allocation2 + $0x28] sm:$0xff]
        %v780 = vld [vmem:[#allocation2 + $0x30] sm:$0xff]
        %v781 = vld [vmem:[#allocation2 + $0x38] sm:$0xf]
        %v782 = vpack.c.bf16 %v775, %v774
        %v783 = vpack.c.bf16 %v777, %v776
        %v784 = vpack.c.bf16 %v779, %v778
        %v785 = vpack.c.bf16 %v781, %v780
        %v786 = vld [vmem:[#allocation5] sm:$0xf]
        %v787 = vld [vmem:[#allocation2 + $0x1] sm:$0xff]
        %v788 = vld [vmem:[#allocation2 + $0x9] sm:$0xff]
        %v789 = vld [vmem:[#allocation2 + $0x11] sm:$0xff]
        %v790 = vld [vmem:[#allocation2 + $0x19] sm:$0xff]
        %v791 = vld [vmem:[#allocation2 + $0x21] sm:$0xff]
        %v792 = vld [vmem:[#allocation2 + $0x29] sm:$0xff]
        %v793 = vld [vmem:[#allocation2 + $0x31] sm:$0xff]
        %v794 = vld [vmem:[#allocation2 + $0x39] sm:$0xf]
        %v795 = vpack.c.bf16 %v788, %v787
        %v796 = vpack.c.bf16 %v790, %v789
        %v797 = vpack.c.bf16 %v792, %v791
        %v798 = vpack.c.bf16 %v794, %v793
        %v799 = vld [vmem:[#allocation5 + $0x8] sm:$0xf]
        %v801 = vsel %vm765, %v795, 0
        %v804 = vsel %vm765, %v796, 0
        %v807 = vsel %vm765, %v797, 0
        %v810 = vsel %vm765, %v798, 0
        %vm812 = vcmask 1043456
        %v814 = vsel %vm812, %v799, 0
        %816 = vmatpush.bf16.msra.mxu0 0
        %817 = vmatpush.bf16.msra.mxu0 0
        %818 = vmatpush.bf16.msra.mxu0 0
        %819 = vmatpush.bf16.msra.mxu0 0
        %820 = vmatpush.bf16.msra.mxu0 0
        %821 = vmatpush.bf16.msra.mxu0 0
        %822 = vmatpush.bf16.msra.mxu0 0
        %823 = vmatpush.bf16.msra.mxu0 %v814
        %824 = vmatmul.bf16.gmra.mxu0 %v801
        %v825 = vpop.f32.mrf.mxu0
        %v826 = vadd.f32 0.0, %v825
        %v827 = vpop.f32.mrf.mxu0
        %v828 = vadd.f32 0.0, %v827
        %829 = vmatmul.bf16.gmra.mxu0 %v804
        %v830 = vpop.f32.mrf.mxu0
        %v831 = vadd.f32 0.0, %v830
        %v832 = vpop.f32.mrf.mxu0
        %v833 = vadd.f32 0.0, %v832
        %834 = vmatmul.bf16.gmra.mxu0 %v807
        %v835 = vpop.f32.mrf.mxu0
        %v836 = vadd.f32 0.0, %v835
        %v837 = vpop.f32.mrf.mxu0
        %v838 = vadd.f32 0.0, %v837
        %839 = vmatmul.bf16.gmra.mxu0 %v810
        %v840 = vpop.f32.mrf.mxu0
        %v841 = vadd.f32 0.0, %v840
        %v842 = vpop.f32.mrf.mxu0
        %v843 = vadd.f32 0.0, %v842
        %844 = vdwg.mxu0
        %v846 = vsel %vm765, %v782, 0
        %v849 = vsel %vm765, %v783, 0
        %v852 = vsel %vm765, %v784, 0
        %v855 = vsel %vm765, %v785, 0
        %v858 = vsel %vm812, %v786, 0
        %860 = vmatpush.bf16.msra.mxu0 0
        %861 = vmatpush.bf16.msra.mxu0 0
        %862 = vmatpush.bf16.msra.mxu0 0
        %863 = vmatpush.bf16.msra.mxu0 0
        %864 = vmatpush.bf16.msra.mxu0 0
        %865 = vmatpush.bf16.msra.mxu0 0
        %866 = vmatpush.bf16.msra.mxu0 0
        %867 = vmatpush.bf16.msra.mxu0 %v858
        %868 = vmatmul.bf16.gmra.mxu0 %v846
        %v869 = vpop.f32.mrf.mxu0
        %v870 = vadd.f32 %v826, %v869
        %v871 = vpop.f32.mrf.mxu0
        %v872 = vadd.f32 %v828, %v871
        %873 = vmatmul.bf16.gmra.mxu0 %v849
        %v874 = vpop.f32.mrf.mxu0
        %v875 = vadd.f32 %v831, %v874
        %v876 = vpop.f32.mrf.mxu0
        %v877 = vadd.f32 %v833, %v876
        %878 = vmatmul.bf16.gmra.mxu0 %v852
        %v879 = vpop.f32.mrf.mxu0
        %v880 = vadd.f32 %v836, %v879
        %v881 = vpop.f32.mrf.mxu0
        %v882 = vadd.f32 %v838, %v881
        %883 = vmatmul.bf16.gmra.mxu0 %v855
        %v884 = vpop.f32.mrf.mxu0
        %v885 = vadd.f32 %v841, %v884
        %v886 = vpop.f32.mrf.mxu0
        %v887 = vadd.f32 %v843, %v886
        %888 = vdwg.mxu0
        %v889 = vld [vmem:[#allocation2 + $0x2] sm:$0xff]
        %v890 = vld [vmem:[#allocation2 + $0xa] sm:$0xff]
        %v891 = vld [vmem:[#allocation2 + $0x12] sm:$0xff]
        %v892 = vld [vmem:[#allocation2 + $0x1a] sm:$0xff]
        %v893 = vld [vmem:[#allocation2 + $0x22] sm:$0xff]
        %v894 = vld [vmem:[#allocation2 + $0x2a] sm:$0xff]
        %v895 = vld [vmem:[#allocation2 + $0x32] sm:$0xff]
        %v896 = vld [vmem:[#allocation2 + $0x3a] sm:$0xf]
        %v897 = vpack.c.bf16 %v890, %v889
        %v898 = vpack.c.bf16 %v892, %v891
        %v899 = vpack.c.bf16 %v894, %v893
        %v900 = vpack.c.bf16 %v896, %v895
        %v901 = vld [vmem:[#allocation5 + $0x10] sm:$0xf]
        %v903 = vsel %vm765, %v897, 0
        %v906 = vsel %vm765, %v898, 0
        %v909 = vsel %vm765, %v899, 0
        %v912 = vsel %vm765, %v900, 0
        %v915 = vsel %vm812, %v901, 0
        %917 = vmatpush.bf16.msra.mxu0 0
        %918 = vmatpush.bf16.msra.mxu0 0
        %919 = vmatpush.bf16.msra.mxu0 0
        %920 = vmatpush.bf16.msra.mxu0 0
        %921 = vmatpush.bf16.msra.mxu0 0
        %922 = vmatpush.bf16.msra.mxu0 0
        %923 = vmatpush.bf16.msra.mxu0 0
        %924 = vmatpush.bf16.msra.mxu0 %v915
        %925 = vmatmul.bf16.gmra.mxu0 %v903
        %v926 = vpop.f32.mrf.mxu0
        %v927 = vadd.f32 0.0, %v926
        %v928 = vpop.f32.mrf.mxu0
        %v929 = vadd.f32 0.0, %v928
        %930 = vmatmul.bf16.gmra.mxu0 %v906
        %v931 = vpop.f32.mrf.mxu0
        %v932 = vadd.f32 0.0, %v931
        %v933 = vpop.f32.mrf.mxu0
        %v934 = vadd.f32 0.0, %v933
        %935 = vmatmul.bf16.gmra.mxu0 %v909
        %v936 = vpop.f32.mrf.mxu0
        %v937 = vadd.f32 0.0, %v936
        %v938 = vpop.f32.mrf.mxu0
        %v939 = vadd.f32 0.0, %v938
        %940 = vmatmul.bf16.gmra.mxu0 %v912
        %v941 = vpop.f32.mrf.mxu0
        %v942 = vadd.f32 0.0, %v941
        %v943 = vpop.f32.mrf.mxu0
        %v944 = vadd.f32 0.0, %v943
        %945 = vdwg.mxu0
        %v946 = vadd.f32 %v870, %v927
        %v947 = vadd.f32 %v872, %v929
        %v948 = vadd.f32 %v875, %v932
        %v949 = vadd.f32 %v877, %v934
        %v950 = vadd.f32 %v880, %v937
        %v951 = vadd.f32 %v882, %v939
        %v952 = vadd.f32 %v885, %v942
        %v953 = vadd.f32 %v887, %v944
        %v954 = vmax.f32 %v946, 0.0
        %v955 = vmax.f32 %v947, 0.0
        %v956 = vmax.f32 %v948, 0.0
        %v957 = vmax.f32 %v949, 0.0
        %v958 = vmax.f32 %v950, 0.0
        %v959 = vmax.f32 %v951, 0.0
        %v960 = vmax.f32 %v952, 0.0
        %v961 = vmax.f32 %v953, 0.0
        %v962 = vld [vmem:[%s2 + $0x10] sm:$0x1]
        %v963 = vperm.slane %v962, 0
        %v964 = vmul.f32 %v954, %v963
        %v965 = vmul.f32 %v955, %v963
        %v966 = vmul.f32 %v956, %v963
        %v967 = vmul.f32 %v957, %v963
        %v968 = vmul.f32 %v958, %v963
        %v969 = vmul.f32 %v959, %v963
        %v970 = vmul.f32 %v960, %v963
        %v971 = vmul.f32 %v961, %v963
        %v972 = vld [vmem:[%s2 + $0x11] sm:$0x1]
        %v973 = vperm.slane %v972, 0
        %v974 = vadd.f32 %v964, %v973
        %v975 = vadd.f32 %v965, %v973
        %v976 = vadd.f32 %v966, %v973
        %v977 = vadd.f32 %v967, %v973
        %v978 = vadd.f32 %v968, %v973
        %v979 = vadd.f32 %v969, %v973
        %v980 = vadd.f32 %v970, %v973
        %v981 = vadd.f32 %v971, %v973
        %v982 = vld [vmem:[#allocation5 + $0xa0] sm:$0xf]
        %v983 = vld [vmem:[#allocation5 + $0xa4] sm:$0xf]
        %v984 = vld [vmem:[#allocation5 + $0xa8] sm:$0xf]
        %v985 = vld [vmem:[#allocation5 + $0xac] sm:$0xf]
        %v986 = vld [vmem:[#allocation5 + $0xb0] sm:$0xf]
        %v987 = vld [vmem:[#allocation5 + $0xb4] sm:$0xf]
        %v988 = vld [vmem:[#allocation5 + $0xb8] sm:$0xf]
        %v989 = vld [vmem:[#allocation5 + $0xbc] sm:$0xf]
        %v990 = vpack.c.bf16 %v975, %v974
        %v991 = vpack.c.bf16 %v977, %v976
        %v992 = vpack.c.bf16 %v979, %v978
        %v993 = vpack.c.bf16 %v981, %v980
        %v1002 = vunpack.c.l.b16 %v982
        %v1003 = vunpack.c.l.b16 %v983
        %v1004 = vunpack.c.l.b16 %v984
        %v1005 = vunpack.c.l.b16 %v985
        %v1006 = vunpack.c.l.b16 %v986
        %v1007 = vunpack.c.l.b16 %v987
        %v1008 = vunpack.c.l.b16 %v988
        %v1009 = vunpack.c.l.b16 %v989
        %v1010 = vpack.c.b16 %v1003, %v1002
        %v1011 = vpack.c.b16 %v1005, %v1004
        %v1012 = vpack.c.b16 %v1007, %v1006
        %v1013 = vpack.c.b16 %v1009, %v1008
        %vm1014 = vcmask 490496
        %v1016 = vsel %vm1014, %v1010, 0
        %v1019 = vsel %vm1014, %v1011, 0
        %v1022 = vsel %vm1014, %v1012, 0
        %v1025 = vsel %vm1014, %v1013, 0
        %v1028 = vsel %vm704, %v993, 0
        %1030 = vmatpush.bf16.msra.mxu0 0
        %1031 = vmatpush.bf16.msra.mxu0 0
        %1032 = vmatpush.bf16.msra.mxu0 0
        %1033 = vmatpush.bf16.msra.mxu0 0
        %1034 = vmatpush.bf16.msra.mxu0 %v1028
        %1035 = vmatpush.bf16.msra.mxu0 %v992
        %1036 = vmatpush.bf16.msra.mxu0 %v991
        %1037 = vmatpush.bf16.msra.mxu0 %v990
        %1038 = vmatmul.bf16.gmra.mxu0 %v1016
        %v1039 = vpop.f32.mrf.mxu0
        %v1040 = vadd.f32 0.0, %v1039
        %v1041 = vpop.f32.mrf.mxu0
        %v1042 = vadd.f32 0.0, %v1041
        %1043 = vmatmul.bf16.gmra.mxu0 %v1019
        %v1044 = vpop.f32.mrf.mxu0
        %v1045 = vadd.f32 0.0, %v1044
        %v1046 = vpop.f32.mrf.mxu0
        %v1047 = vadd.f32 0.0, %v1046
        %1048 = vmatmul.bf16.gmra.mxu0 %v1022
        %v1049 = vpop.f32.mrf.mxu0
        %v1050 = vadd.f32 0.0, %v1049
        %v1051 = vpop.f32.mrf.mxu0
        %v1052 = vadd.f32 0.0, %v1051
        %1053 = vmatmul.bf16.gmra.mxu0 %v1025
        %v1054 = vpop.f32.mrf.mxu0
        %v1055 = vadd.f32 0.0, %v1054
        %v1056 = vpop.f32.mrf.mxu0
        %v1057 = vadd.f32 0.0, %v1056
        %1058 = vdwg.mxu0
        %v1059 = vmax.f32 %v1040, %v1050
        %v1060 = vmax.f32 %v1042, %v1052
        %v1061 = vmax.f32 %v1045, %v1055
        %v1062 = vmax.f32 %v1047, %v1057
        %vm1063 = vcmask 130048
        %1064 = vst.msk [vmem:[#allocation3] sm:$0xff] %vm1063, %v1059
        %1065 = vst.msk [vmem:[#allocation3 + $0x8] sm:$0xff] %vm1063, %v1060
        %1066 = vst.msk [vmem:[#allocation3 + $0x10] sm:$0xff] %vm1063, %v1061
        %1067 = vst.msk [vmem:[#allocation3 + $0x18] sm:$0xff] %vm1063, %v1062
        %v1068 = vld [vmem:[#allocation3] sm:$0xff]
        %v1069 = vld [vmem:[#allocation3 + $0x8] sm:$0xff]
        %v1070 = vld [vmem:[#allocation3 + $0x10] sm:$0xff]
        %v1071 = vld [vmem:[#allocation3 + $0x18] sm:$0xf]
        %v1072 = vpack.c.bf16 %v1069, %v1068
        %v1073 = vpack.c.bf16 %v1071, %v1070
        %v1074 = vld [vmem:[#allocation5 + $0x18] sm:$0xf]
        %v1075 = vld [vmem:[#allocation5 + $0x1c] sm:$0xf]
        %v1076 = vld [vmem:[#allocation3 + $0x1] sm:$0xff]
        %v1077 = vld [vmem:[#allocation3 + $0x9] sm:$0xff]
        %v1078 = vld [vmem:[#allocation3 + $0x11] sm:$0xff]
        %v1079 = vld [vmem:[#allocation3 + $0x19] sm:$0xf]
        %v1080 = vpack.c.bf16 %v1077, %v1076
        %v1081 = vpack.c.bf16 %v1079, %v1078
        %v1082 = vld [vmem:[#allocation5 + $0x20] sm:$0xf]
        %v1083 = vld [vmem:[#allocation5 + $0x24] sm:$0xf]
        %v1086 = vunpack.c.l.b16 %v1082
        %v1087 = vunpack.c.l.b16 %v1083
        %v1088 = vpack.c.b16 %v1087, %v1086
        %v1091 = vsel %vm1063, %v1080, 0
        %v1094 = vsel %vm1063, %v1081, 0
        %1096 = vmatpush.bf16.msra.mxu0 0
        %1097 = vmatpush.bf16.msra.mxu0 0
        %1098 = vmatpush.bf16.msra.mxu0 0
        %1099 = vmatpush.bf16.msra.mxu0 0
        %1100 = vmatpush.bf16.msra.mxu0 0
        %1101 = vmatpush.bf16.msra.mxu0 0
        %1102 = vmatpush.bf16.msra.mxu0 0
        %1103 = vmatpush.bf16.msra.mxu0 %v1088
        %1104 = vmatmul.bf16.gmra.mxu0 %v1091
        %v1105 = vpop.f32.mrf.mxu0
        %v1106 = vadd.f32 0.0, %v1105
        %v1107 = vpop.f32.mrf.mxu0
        %v1108 = vadd.f32 0.0, %v1107
        %1109 = vmatmul.bf16.gmra.mxu0 %v1094
        %v1110 = vpop.f32.mrf.mxu0
        %v1111 = vadd.f32 0.0, %v1110
        %v1112 = vpop.f32.mrf.mxu0
        %v1113 = vadd.f32 0.0, %v1112
        %1114 = vdwg.mxu0
        %v1117 = vunpack.c.l.b16 %v1074
        %v1118 = vunpack.c.l.b16 %v1075
        %v1119 = vpack.c.b16 %v1118, %v1117
        %v1122 = vsel %vm1063, %v1072, 0
        %v1125 = vsel %vm1063, %v1073, 0
        %1127 = vmatpush.bf16.msra.mxu0 0
        %1128 = vmatpush.bf16.msra.mxu0 0
        %1129 = vmatpush.bf16.msra.mxu0 0
        %1130 = vmatpush.bf16.msra.mxu0 0
        %1131 = vmatpush.bf16.msra.mxu0 0
        %1132 = vmatpush.bf16.msra.mxu0 0
        %1133 = vmatpush.bf16.msra.mxu0 0
        %1134 = vmatpush.bf16.msra.mxu0 %v1119
        %1135 = vmatmul.bf16.gmra.mxu0 %v1122
        %v1136 = vpop.f32.mrf.mxu0
        %v1137 = vadd.f32 %v1106, %v1136
        %v1138 = vpop.f32.mrf.mxu0
        %v1139 = vadd.f32 %v1108, %v1138
        %1140 = vmatmul.bf16.gmra.mxu0 %v1125
        %v1141 = vpop.f32.mrf.mxu0
        %v1142 = vadd.f32 %v1111, %v1141
        %v1143 = vpop.f32.mrf.mxu0
        %v1144 = vadd.f32 %v1113, %v1143
        %1145 = vdwg.mxu0
        %v1146 = vld [vmem:[#allocation3 + $0x2] sm:$0xff]
        %v1147 = vld [vmem:[#allocation3 + $0xa] sm:$0xff]
        %v1148 = vld [vmem:[#allocation3 + $0x12] sm:$0xff]
        %v1149 = vld [vmem:[#allocation3 + $0x1a] sm:$0xf]
        %v1150 = vpack.c.bf16 %v1147, %v1146
        %v1151 = vpack.c.bf16 %v1149, %v1148
        %v1152 = vld [vmem:[#allocation5 + $0x28] sm:$0xf]
        %v1153 = vld [vmem:[#allocation5 + $0x2c] sm:$0xf]
        %v1156 = vunpack.c.l.b16 %v1152
        %v1157 = vunpack.c.l.b16 %v1153
        %v1158 = vpack.c.b16 %v1157, %v1156
        %v1161 = vsel %vm1063, %v1150, 0
        %v1164 = vsel %vm1063, %v1151, 0
        %1166 = vmatpush.bf16.msra.mxu0 0
        %1167 = vmatpush.bf16.msra.mxu0 0
        %1168 = vmatpush.bf16.msra.mxu0 0
        %1169 = vmatpush.bf16.msra.mxu0 0
        %1170 = vmatpush.bf16.msra.mxu0 0
        %1171 = vmatpush.bf16.msra.mxu0 0
        %1172 = vmatpush.bf16.msra.mxu0 0
        %1173 = vmatpush.bf16.msra.mxu0 %v1158
        %1174 = vmatmul.bf16.gmra.mxu0 %v1161
        %v1175 = vpop.f32.mrf.mxu0
        %v1176 = vadd.f32 0.0, %v1175
        %v1177 = vpop.f32.mrf.mxu0
        %v1178 = vadd.f32 0.0, %v1177
        %1179 = vmatmul.bf16.gmra.mxu0 %v1164
        %v1180 = vpop.f32.mrf.mxu0
        %v1181 = vadd.f32 0.0, %v1180
        %v1182 = vpop.f32.mrf.mxu0
        %v1183 = vadd.f32 0.0, %v1182
        %1184 = vdwg.mxu0
        %v1185 = vadd.f32 %v1137, %v1176
        %v1186 = vadd.f32 %v1139, %v1178
        %v1187 = vadd.f32 %v1142, %v1181
        %v1188 = vadd.f32 %v1144, %v1183
        %v1189 = vmax.f32 %v1185, 0.0
        %v1190 = vmax.f32 %v1186, 0.0
        %v1191 = vmax.f32 %v1187, 0.0
        %v1192 = vmax.f32 %v1188, 0.0
        %v1193 = vld [vmem:[%s2 + $0x18] sm:$0x1]
        %v1194 = vperm.slane %v1193, 0
        %v1195 = vmul.f32 %v1189, %v1194
        %v1196 = vmul.f32 %v1190, %v1194
        %v1197 = vmul.f32 %v1191, %v1194
        %v1198 = vmul.f32 %v1192, %v1194
        %v1199 = vld [vmem:[%s2 + $0x19] sm:$0x1]
        %v1200 = vperm.slane %v1199, 0
        %v1201 = vadd.f32 %v1195, %v1200
        %v1202 = vadd.f32 %v1196, %v1200
        %v1203 = vadd.f32 %v1197, %v1200
        %v1204 = vadd.f32 %v1198, %v1200
        %v1205 = vld [vmem:[#allocation5 + $0xc0] sm:$0xf]
        %v1206 = vld [vmem:[#allocation5 + $0xc4] sm:$0xf]
        %v1207 = vld [vmem:[#allocation5 + $0xc8] sm:$0xf]
        %v1208 = vld [vmem:[#allocation5 + $0xcc] sm:$0xf]
        %v1209 = vpack.c.bf16 %v1202, %v1201
        %v1210 = vpack.c.bf16 %v1204, %v1203
        %v1215 = vunpack.c.l.b16 %v1205
        %v1216 = vunpack.c.l.b16 %v1206
        %v1217 = vunpack.c.l.b16 %v1207
        %v1218 = vunpack.c.l.b16 %v1208
        %v1219 = vpack.c.b16 %v1216, %v1215
        %v1220 = vpack.c.b16 %v1218, %v1217
        %vm1221 = vcmask 228352
        %v1223 = vsel %vm1221, %v1219, 0
        %v1226 = vsel %vm1221, %v1220, 0
        %v1229 = vsel %vm704, %v1210, 0
        %1231 = vmatpush.bf16.msra.mxu0 0
        %1232 = vmatpush.bf16.msra.mxu0 0
        %1233 = vmatpush.bf16.msra.mxu0 0
        %1234 = vmatpush.bf16.msra.mxu0 0
        %1235 = vmatpush.bf16.msra.mxu0 0
        %1236 = vmatpush.bf16.msra.mxu0 0
        %1237 = vmatpush.bf16.msra.mxu0 %v1229
        %1238 = vmatpush.bf16.msra.mxu0 %v1209
        %1239 = vmatmul.bf16.gmra.mxu0 %v1223
        %v1240 = vpop.f32.mrf.mxu0
        %v1241 = vadd.f32 0.0, %v1240
        %v1242 = vpop.f32.mrf.mxu0
        %v1243 = vadd.f32 0.0, %v1242
        %1244 = vmatmul.bf16.gmra.mxu0 %v1226
        %v1245 = vpop.f32.mrf.mxu0
        %v1246 = vadd.f32 0.0, %v1245
        %v1247 = vpop.f32.mrf.mxu0
        %v1248 = vadd.f32 0.0, %v1247
        %1249 = vdwg.mxu0
        %v1250 = vmax.f32 %v1241, %v1246
        %v1251 = vmax.f32 %v1243, %v1248
        %vm1252 = vcmask 261120
        %1253 = vst.msk [vmem:[#allocation4] sm:$0xff] %vm1252, %v1250
        %1254 = vst.msk [vmem:[#allocation4 + $0x8] sm:$0xff] %vm1252, %v1251
        %v1255 = vld [vmem:[#allocation4] sm:$0xff]
        %v1256 = vld [vmem:[#allocation4 + $0x8] sm:$0xf]
        %v1257 = vpack.c.bf16 %v1256, %v1255
        %v1258 = vld [vmem:[#allocation5 + $0x30] sm:$0xf]
        %v1259 = vld [vmem:[#allocation5 + $0x34] sm:$0xf]
        %v1260 = vld [vmem:[#allocation5 + $0x38] sm:$0xf]
        %v1261 = vld [vmem:[#allocation5 + $0x3c] sm:$0xf]
        %v1262 = vld [vmem:[#allocation4 + $0x1] sm:$0xff]
        %v1263 = vld [vmem:[#allocation4 + $0x9] sm:$0xf]
        %v1264 = vpack.c.bf16 %v1263, %v1262
        %v1265 = vld [vmem:[#allocation5 + $0x40] sm:$0xf]
        %v1266 = vld [vmem:[#allocation5 + $0x44] sm:$0xf]
        %v1267 = vld [vmem:[#allocation5 + $0x48] sm:$0xf]
        %v1268 = vld [vmem:[#allocation5 + $0x4c] sm:$0xf]
        %v1273 = vunpack.c.l.b16 %v1265
        %v1274 = vunpack.c.l.b16 %v1266
        %v1275 = vunpack.c.l.b16 %v1267
        %v1276 = vunpack.c.l.b16 %v1268
        %v1277 = vpack.c.b16 %v1274, %v1273
        %v1278 = vpack.c.b16 %v1276, %v1275
        %v1282 = vsel %vm1252, %v1264, 0
        %1284 = vmatpush.bf16.msra.mxu0 0
        %1285 = vmatpush.bf16.msra.mxu0 0
        %1286 = vmatpush.bf16.msra.mxu0 0
        %1287 = vmatpush.bf16.msra.mxu0 0
        %1288 = vmatpush.bf16.msra.mxu0 0
        %1289 = vmatpush.bf16.msra.mxu0 0
        %1290 = vmatpush.bf16.msra.mxu0 %v1278
        %1291 = vmatpush.bf16.msra.mxu0 %v1277
        %1292 = vmatmul.bf16.gmra.mxu0 %v1282
        %v1293 = vpop.f32.mrf.mxu0
        %v1294 = vadd.f32 0.0, %v1293
        %v1295 = vpop.f32.mrf.mxu0
        %v1296 = vadd.f32 0.0, %v1295
        %1297 = vdwg.mxu0
        %v1302 = vunpack.c.l.b16 %v1258
        %v1303 = vunpack.c.l.b16 %v1259
        %v1304 = vunpack.c.l.b16 %v1260
        %v1305 = vunpack.c.l.b16 %v1261
        %v1306 = vpack.c.b16 %v1303, %v1302
        %v1307 = vpack.c.b16 %v1305, %v1304
        %v1311 = vsel %vm1252, %v1257, 0
        %1313 = vmatpush.bf16.msra.mxu0 0
        %1314 = vmatpush.bf16.msra.mxu0 0
        %1315 = vmatpush.bf16.msra.mxu0 0
        %1316 = vmatpush.bf16.msra.mxu0 0
        %1317 = vmatpush.bf16.msra.mxu0 0
        %1318 = vmatpush.bf16.msra.mxu0 0
        %1319 = vmatpush.bf16.msra.mxu0 %v1307
        %1320 = vmatpush.bf16.msra.mxu0 %v1306
        %1321 = vmatmul.bf16.gmra.mxu0 %v1311
        %v1322 = vpop.f32.mrf.mxu0
        %v1323 = vadd.f32 %v1294, %v1322
        %v1324 = vpop.f32.mrf.mxu0
        %v1325 = vadd.f32 %v1296, %v1324
        %1326 = vdwg.mxu0
        %v1327 = vld [vmem:[#allocation4 + $0x2] sm:$0xff]
        %v1328 = vld [vmem:[#allocation4 + $0xa] sm:$0xf]
        %v1329 = vpack.c.bf16 %v1328, %v1327
        %v1330 = vld [vmem:[#allocation5 + $0x50] sm:$0xf]
        %v1331 = vld [vmem:[#allocation5 + $0x54] sm:$0xf]
        %v1332 = vld [vmem:[#allocation5 + $0x58] sm:$0xf]
        %v1333 = vld [vmem:[#allocation5 + $0x5c] sm:$0xf]
        %v1338 = vunpack.c.l.b16 %v1330
        %v1339 = vunpack.c.l.b16 %v1331
        %v1340 = vunpack.c.l.b16 %v1332
        %v1341 = vunpack.c.l.b16 %v1333
        %v1342 = vpack.c.b16 %v1339, %v1338
        %v1343 = vpack.c.b16 %v1341, %v1340
        %v1347 = vsel %vm1252, %v1329, 0
        %1349 = vmatpush.bf16.msra.mxu0 0
        %1350 = vmatpush.bf16.msra.mxu0 0
        %1351 = vmatpush.bf16.msra.mxu0 0
        %1352 = vmatpush.bf16.msra.mxu0 0
        %1353 = vmatpush.bf16.msra.mxu0 0
        %1354 = vmatpush.bf16.msra.mxu0 0
        %1355 = vmatpush.bf16.msra.mxu0 %v1343
        %1356 = vmatpush.bf16.msra.mxu0 %v1342
        %1357 = vmatmul.bf16.gmra.mxu0 %v1347
        %v1358 = vpop.f32.mrf.mxu0
        %v1359 = vadd.f32 0.0, %v1358
        %v1360 = vpop.f32.mrf.mxu0
        %v1361 = vadd.f32 0.0, %v1360
        %1362 = vdwg.mxu0
        %v1363 = vadd.f32 %v1323, %v1359
        %v1364 = vadd.f32 %v1325, %v1361
        %v1365 = vmax.f32 %v1363, 0.0
        %v1366 = vmax.f32 %v1364, 0.0
        %v1367 = vld [vmem:[%s2 + $0x20] sm:$0x1]
        %v1368 = vperm.slane %v1367, 0
        %v1369 = vmul.f32 %v1365, %v1368
        %v1370 = vmul.f32 %v1366, %v1368
        %v1371 = vld [vmem:[%s2 + $0x21] sm:$0x1]
        %v1372 = vperm.slane %v1371, 0
        %v1373 = vadd.f32 %v1369, %v1372
        %v1374 = vadd.f32 %v1370, %v1372
        %v1375 = vpack.c.bf16 %v1374, %v1373
        %v1376 = vld [vmem:[#allocation5 + $0xd0] sm:$0xf]
        %v1377 = vld [vmem:[#allocation5 + $0xd4] sm:$0xf]
        %v1378 = vld [vmem:[#allocation5 + $0xd8] sm:$0xf]
        %v1382 = vunpack.c.l.b16 %v1376
        %v1383 = vunpack.c.l.b16 %v1377
        %v1384 = vunpack.c.l.b16 %v1378
        %v1385 = vpack.c.b16 %v1383, %v1382
        %v1386 = vpack.c.b16 %v1384, %v1384
        %vm1387 = vcmask 97280
        %v1389 = vsel %vm1387, %v1385, 0
        %v1392 = vsel %vm1387, %v1386, 0
        %v1395 = vsel %vm704, %v1375, 0
        %1397 = vmatpush.bf16.msra.mxu0 0
        %1398 = vmatpush.bf16.msra.mxu0 0
        %1399 = vmatpush.bf16.msra.mxu0 0
        %1400 = vmatpush.bf16.msra.mxu0 0
        %1401 = vmatpush.bf16.msra.mxu0 0
        %1402 = vmatpush.bf16.msra.mxu0 0
        %1403 = vmatpush.bf16.msra.mxu0 0
        %1404 = vmatpush.bf16.msra.mxu0 %v1395
        %1405 = vmatmul.bf16.gmra.mxu0 %v1389
        %v1406 = vpop.f32.mrf.mxu0
        %v1407 = vadd.f32 0.0, %v1406
        %v1408 = vpop.f32.mrf.mxu0
        %v1409 = vadd.f32 0.0, %v1408
        %1410 = vmatmul.bf16.gmra.mxu0 %v1392
        %v1411 = vpop.f32.mrf.mxu0
        %v1412 = vadd.f32 0.0, %v1411
        %v1413 = vpop.f32.mrf.mxu0
        %1414 = vdwg.mxu0
        %v1415 = vpack.c.bf16 %v1409, %v1407
        %v1416 = vpack.c.bf16 %v1412, %v1412
        %v1417 = vld [vmem:[#allocation5 + $0xe0] sm:$0xf]
        %v1418 = vld [vmem:[#allocation5 + $0xe4] sm:$0xf]
        %v1419 = vld [vmem:[#allocation5 + $0xe8] sm:$0xf]
        %v1420 = vld [vmem:[#allocation5 + $0xec] sm:$0xf]
        %v1421 = vld [vmem:[#allocation5 + $0xf0] sm:$0xf]
        %v1422 = vld [vmem:[#allocation5 + $0xf4] sm:$0xf]
        %v1423 = vld [vmem:[#allocation5 + $0xf8] sm:$0xf]
        %v1424 = vld [vmem:[#allocation5 + $0xfc] sm:$0xf]
        %v1425 = vld [vmem:[%s2 + $0x28] sm:$0x1]
        %v1426 = vperm.slane %v1425, 0
        %v1435 = vunpack.c.l.b16 %v1417
        %v1436 = vunpack.c.l.b16 %v1418
        %v1437 = vunpack.c.l.b16 %v1419
        %v1438 = vunpack.c.l.b16 %v1420
        %v1439 = vunpack.c.l.b16 %v1421
        %v1440 = vunpack.c.l.b16 %v1422
        %v1441 = vunpack.c.l.b16 %v1423
        %v1442 = vunpack.c.l.b16 %v1424
        %v1443 = vpack.c.b16 %v1436, %v1435
        %v1444 = vpack.c.b16 %v1438, %v1437
        %v1445 = vpack.c.b16 %v1440, %v1439
        %v1446 = vpack.c.b16 %v1442, %v1441
        %vm1451 = vcmask 523264
        %v1453 = vsel %vm1451, %v1415, 0
        %v1456 = vsel %vm1451, %v1416, 0
        %1458 = vmatpush.bf16.msra.mxu0 0
        %1459 = vmatpush.bf16.msra.mxu0 0
        %1460 = vmatpush.bf16.msra.mxu0 0
        %1461 = vmatpush.bf16.msra.mxu0 0
        %1462 = vmatpush.bf16.msra.mxu0 %v1446
        %1463 = vmatpush.bf16.msra.mxu0 %v1445
        %1464 = vmatpush.bf16.msra.mxu0 %v1444
        %1465 = vmatpush.bf16.msra.mxu0 %v1443
        %1466 = vmatmul.bf16.gmra.mxu0 %v1453
        %v1467 = vpop.f32.mrf.mxu0
        %v1468 = vadd.f32 %v1426, %v1467
        %v1469 = vpop.f32.mrf.mxu0
        %v1470 = vadd.f32 %v1426, %v1469
        %1471 = vmatmul.bf16.gmra.mxu0 %v1456
        %v1472 = vpop.f32.mrf.mxu0
        %v1473 = vadd.f32 %v1426, %v1472
        %v1474 = vpop.f32.mrf.mxu0
        %1475 = vdwg.mxu0
        %v1476 = vmax.f32 %v1468, 0.0
        %v1477 = vmax.f32 %v1470, 0.0
        %v1478 = vmax.f32 %v1473, 0.0
        %v1479 = vld [vmem:[%s2 + $0x29] sm:$0x1]
        %v1480 = vperm.slane %v1479, 0
        %v1481 = vmul.f32 %v1476, %v1480
        %v1482 = vmul.f32 %v1477, %v1480
        %v1483 = vmul.f32 %v1478, %v1480
        %v1484 = vld [vmem:[%s2 + $0x2a] sm:$0x1]
        %v1485 = vperm.slane %v1484, 0
        %v1486 = vadd.f32 %v1481, %v1485
        %v1487 = vadd.f32 %v1482, %v1485
        %v1488 = vadd.f32 %v1483, %v1485
        %v1489 = vld [vmem:[%s2 + $0x30] sm:$0xff]
        %v1490 = vld [vmem:[%s2 + $0x38] sm:$0xff]
        %v1491 = vld [vmem:[%s2 + $0x40] sm:$0xff]
        %v1492 = vmul.f32 %v1486, %v1489
        %v1493 = vmul.f32 %v1487, %v1490
        %v1494 = vmul.f32 %v1488, %v1491
        %v1495 = vld [vmem:[#allocation5 + $0x100] sm:$0xf]
        %v1496 = vld [vmem:[#allocation5 + $0x104] sm:$0x3]
        %v1497 = vpack.c.bf16 %v1493, %v1492
        %v1498 = vpack.c.bf16 %v1494, %v1494
        %v1501 = vunpack.c.l.b16 %v1495
        %v1502 = vunpack.c.l.b16 %v1496
        %v1503 = vpack.c.b16 %v1502, %v1501
        %vm1504 = vcmask 195584
        %v1506 = vsel %vm1504, %v1503, 0
        %v1509 = vsel %vm812, %v1498, 0
        %1511 = vmatpush.bf16.msra.mxu0 0
        %1512 = vmatpush.bf16.msra.mxu0 0
        %1513 = vmatpush.bf16.msra.mxu0 0
        %1514 = vmatpush.bf16.msra.mxu0 0
        %1515 = vmatpush.bf16.msra.mxu0 0
        %1516 = vmatpush.bf16.msra.mxu0 0
        %1517 = vmatpush.bf16.msra.mxu0 %v1509
        %1518 = vmatpush.bf16.msra.mxu0 %v1497
        %1519 = vmatmul.bf16.gmra.mxu0 %v1506
        %v1520 = vpop.f32.mrf.mxu0
        %v1521 = vadd.f32 0.0, %v1520
        %v1522 = vpop.f32.mrf.mxu0
        %v1523 = vadd.f32 0.0, %v1522
        %1524 = vdwg.mxu0
        %v1525 = vld [vmem:[#allocation5 + $0x108] sm:$0xf]
        %v1526 = vld [vmem:[#allocation5 + $0x10c] sm:$0xf]
        %v1527 = vld [vmem:[#allocation5 + $0x110] sm:$0xf]
        %v1528 = vld [vmem:[#allocation5 + $0x114] sm:$0xf]
        %v1529 = vld [vmem:[#allocation5 + $0x118] sm:$0xf]
        %v1530 = vld [vmem:[#allocation5 + $0x11c] sm:$0xf]
        %v1531 = vld [vmem:[#allocation5 + $0x120] sm:$0xf]
        %v1532 = vld [vmem:[#allocation5 + $0x124] sm:$0xf]
        %v1533 = vpack.c.bf16 %v1523, %v1521
        %v1534 = vld [vmem:[#allocation5 + $0x128] sm:$0xf]
        %v1535 = vld [vmem:[#allocation5 + $0x12c] sm:$0xf]
        %v1536 = vld [vmem:[#allocation5 + $0x130] sm:$0xf]
        %v1537 = vld [vmem:[#allocation5 + $0x134] sm:$0xf]
        %v1538 = vld [vmem:[#allocation5 + $0x138] sm:$0xf]
        %v1539 = vld [vmem:[#allocation5 + $0x13c] sm:$0xf]
        %v1540 = vld [vmem:[#allocation5 + $0x140] sm:$0xf]
        %v1541 = vld [vmem:[#allocation5 + $0x144] sm:$0xf]
        %v1550 = vunpack.c.l.b16 %v1534
        %v1551 = vunpack.c.l.b16 %v1535
        %v1552 = vunpack.c.l.b16 %v1536
        %v1553 = vunpack.c.l.b16 %v1537
        %v1554 = vunpack.c.l.b16 %v1538
        %v1555 = vunpack.c.l.b16 %v1539
        %v1556 = vunpack.c.l.b16 %v1540
        %v1557 = vunpack.c.l.b16 %v1541
        %v1558 = vpack.c.b16 %v1551, %v1550
        %v1559 = vpack.c.b16 %v1553, %v1552
        %v1560 = vpack.c.b16 %v1555, %v1554
        %v1561 = vpack.c.b16 %v1557, %v1556
        %v1567 = vsel %vm1451, %v1533, 0
        %1569 = vmatpush.bf16.msra.mxu0 0
        %1570 = vmatpush.bf16.msra.mxu0 0
        %1571 = vmatpush.bf16.msra.mxu0 0
        %1572 = vmatpush.bf16.msra.mxu0 0
        %1573 = vmatpush.bf16.msra.mxu0 %v1561
        %1574 = vmatpush.bf16.msra.mxu0 %v1560
        %1575 = vmatpush.bf16.msra.mxu0 %v1559
        %1576 = vmatpush.bf16.msra.mxu0 %v1558
        %1577 = vmatmul.bf16.gmra.mxu0 %v1567
        %v1578 = vpop.f32.mrf.mxu0
        %v1579 = vadd.f32 0.0, %v1578
        %v1580 = vpop.f32.mrf.mxu0
        %v1581 = vadd.f32 0.0, %v1580
        %1582 = vdwg.mxu0
        %v1591 = vunpack.c.l.b16 %v1525
        %v1592 = vunpack.c.l.b16 %v1526
        %v1593 = vunpack.c.l.b16 %v1527
        %v1594 = vunpack.c.l.b16 %v1528
        %v1595 = vunpack.c.l.b16 %v1529
        %v1596 = vunpack.c.l.b16 %v1530
        %v1597 = vunpack.c.l.b16 %v1531
        %v1598 = vunpack.c.l.b16 %v1532
        %v1599 = vpack.c.b16 %v1592, %v1591
        %v1600 = vpack.c.b16 %v1594, %v1593
        %v1601 = vpack.c.b16 %v1596, %v1595
        %v1602 = vpack.c.b16 %v1598, %v1597
        %v1607 = vsel %vm1451, %v1375, 0
        %1609 = vmatpush.bf16.msra.mxu0 0
        %1610 = vmatpush.bf16.msra.mxu0 0
        %1611 = vmatpush.bf16.msra.mxu0 0
        %1612 = vmatpush.bf16.msra.mxu0 0
        %1613 = vmatpush.bf16.msra.mxu0 %v1602
        %1614 = vmatpush.bf16.msra.mxu0 %v1601
        %1615 = vmatpush.bf16.msra.mxu0 %v1600
        %1616 = vmatpush.bf16.msra.mxu0 %v1599
        %1617 = vmatmul.bf16.gmra.mxu0 %v1607
        %v1618 = vpop.f32.mrf.mxu0
        %v1619 = vadd.f32 %v1579, %v1618
        %v1620 = vpop.f32.mrf.mxu0
        %v1621 = vadd.f32 %v1581, %v1620
        %1622 = vdwg.mxu0
        %v1623 = vpack.c.bf16 %v1619, %v1619
        %v1624 = vpack.c.bf16 %v1621, %v1621
        %v1625 = vld [vmem:[#allocation5 + $0x148] sm:$0xf]
        %v1626 = vld [vmem:[#allocation5 + $0x14c] sm:$0xf]
        %v1627 = vld [vmem:[#allocation5 + $0x150] sm:$0xf]
        %v1628 = vld [vmem:[#allocation5 + $0x154] sm:$0xf]
        %v1629 = vld [vmem:[#allocation5 + $0x158] sm:$0xf]
        %v1630 = vld [vmem:[#allocation5 + $0x15c] sm:$0xf]
        %v1631 = vld [vmem:[#allocation5 + $0x160] sm:$0xf]
        %v1632 = vld [vmem:[#allocation5 + $0x164] sm:$0xf]
        %v1633 = vld [vmem:[%s2 + $0x48] sm:$0x1]
        %v1634 = vperm.slane %v1633, 0
        %v1637 = vunpack.c.l.b16 %v1623
        %v1638 = vunpack.c.l.b16 %v1624
        %v1639 = vpack.c.b16 %v1638, %v1637
        %v1648 = vunpack.c.l.b16 %v1625
        %v1649 = vunpack.c.l.b16 %v1626
        %v1650 = vunpack.c.l.b16 %v1627
        %v1651 = vunpack.c.l.b16 %v1628
        %v1652 = vunpack.c.l.b16 %v1629
        %v1653 = vunpack.c.l.b16 %v1630
        %v1654 = vunpack.c.l.b16 %v1631
        %v1655 = vunpack.c.l.b16 %v1632
        %v1656 = vpack.c.b16 %v1649, %v1648
        %v1657 = vpack.c.b16 %v1651, %v1650
        %v1658 = vpack.c.b16 %v1653, %v1652
        %v1659 = vpack.c.b16 %v1655, %v1654
        %v1665 = vsel %vm1451, %v1639, 0
        %1667 = vmatpush.bf16.msra.mxu0 0
        %1668 = vmatpush.bf16.msra.mxu0 0
        %1669 = vmatpush.bf16.msra.mxu0 0
        %1670 = vmatpush.bf16.msra.mxu0 0
        %1671 = vmatpush.bf16.msra.mxu0 %v1659
        %1672 = vmatpush.bf16.msra.mxu0 %v1658
        %1673 = vmatpush.bf16.msra.mxu0 %v1657
        %1674 = vmatpush.bf16.msra.mxu0 %v1656
        %1675 = vmatmul.bf16.gmra.mxu0 %v1665
        %v1676 = vpop.f32.mrf.mxu0
        %v1677 = vadd.f32 %v1634, %v1676
        %v1678 = vpop.f32.mrf.mxu0
        %v1679 = vadd.f32 %v1634, %v1678
        %1680 = vdwg.mxu0
        %1681 = vst.msk [vmem:[%s187] sm:$0xff] %vm765, %v1677
        %vm1682 = vcmask 60416
        %1683 = vst.msk [vmem:[%s187 + $0x8] sm:$0xf] %vm1682, %v1679
        %v1684 = vunpack.c.l.bf16 %v1623
        %v1685 = vunpack.c.l.bf16 %v1624
        %v1686 = vmax.f32 %v1684, 0.0
        %v1687 = vmax.f32 %v1685, 0.0
        %v1688 = vpack.c.bf16 %v1687, %v1686
        %v1689 = vld [vmem:[#allocation5 + $0x168] sm:$0xf]
        %v1690 = vld [vmem:[#allocation5 + $0x16c] sm:$0xf]
        %v1691 = vld [vmem:[#allocation5 + $0x170] sm:$0xf]
        %v1692 = vld [vmem:[#allocation5 + $0x174] sm:$0xf]
        %v1693 = vld [vmem:[#allocation5 + $0x178] sm:$0xf]
        %v1694 = vld [vmem:[#allocation5 + $0x17c] sm:$0xf]
        %v1695 = vld [vmem:[#allocation5 + $0x180] sm:$0xf]
        %v1696 = vld [vmem:[#allocation5 + $0x184] sm:$0xf]
        %v1697 = vld [vmem:[%s2 + $0x49] sm:$0x1]
        %v1698 = vperm.slane %v1697, 0
        %v1707 = vunpack.c.l.b16 %v1689
        %v1708 = vunpack.c.l.b16 %v1690
        %v1709 = vunpack.c.l.b16 %v1691
        %v1710 = vunpack.c.l.b16 %v1692
        %v1711 = vunpack.c.l.b16 %v1693
        %v1712 = vunpack.c.l.b16 %v1694
        %v1713 = vunpack.c.l.b16 %v1695
        %v1714 = vunpack.c.l.b16 %v1696
        %v1715 = vpack.c.b16 %v1708, %v1707
        %v1716 = vpack.c.b16 %v1710, %v1709
        %v1717 = vpack.c.b16 %v1712, %v1711
        %v1718 = vpack.c.b16 %v1714, %v1713
        %v1724 = vsel %vm1451, %v1688, 0
        %1726 = vmatpush.bf16.msra.mxu0 0
        %1727 = vmatpush.bf16.msra.mxu0 0
        %1728 = vmatpush.bf16.msra.mxu0 0
        %1729 = vmatpush.bf16.msra.mxu0 0
        %1730 = vmatpush.bf16.msra.mxu0 %v1718
        %1731 = vmatpush.bf16.msra.mxu0 %v1717
        %1732 = vmatpush.bf16.msra.mxu0 %v1716
        %1733 = vmatpush.bf16.msra.mxu0 %v1715
        %1734 = vmatmul.bf16.gmra.mxu0 %v1724
        %v1735 = vpop.f32.mrf.mxu0
        %v1736 = vadd.f32 %v1698, %v1735
        %v1737 = vpop.f32.mrf.mxu0
        %v1738 = vadd.f32 %v1698, %v1737
        %1739 = vdwg.mxu0
        %s1740 = scalar_lea.vmem %s187, 16
        %1741 = vst.msk [vmem:[%s1740] sm:$0xff] %vm765, %v1736
        %1742 = vst.msk [vmem:[%s1740 + $0x8] sm:$0xf] %vm1682, %v1738
        %p1743 = scmp.lt.s32.totalorder %s15, 1
        %s1744 = scalar_select %p1743, %s15, 1
        %s1745 = smul.addr %s1744, 4
        %s1746 = smul.addr %s1745, 8
        %s1747 = scalar_lea.vmem %s3, %s1746
        // Predicated region
        $region37: #{forward.1} parent=31 // pred_check
          %p1748 = pneg %p101
        $region38: #{forward.1} parent=31 // pred_check_branch
          %1750 = sbr.rel (%p1748) target = $region40
        $region39: #{forward.1} parent=31 // pred_region
          _
        $region40: #{forward.1} parent=31 // pred_fallthru
          _
      $region32: #{forward.1} parent=5 // pred_fallthru
        _
      %p1751 = scmp.le.s32.totalorder 2, %s10
      // Predicated region
      $region41: #{forward.1} parent=5 // pred_check
        %p1752 = pneg %p1751
      $region42: #{forward.1} parent=5 // pred_check_branch
        %1754 = sbr.rel (%p1752) target = $region44
      $region43: #{forward.1} parent=5 // pred_region
        %s1755 = ssub.s32 %s10, 2
        // Predicated region
        $region45: #{forward.1} parent=43 // pred_check
          %p1756 = pneg %p107
        $region46: #{forward.1} parent=43 // pred_check_branch
          %1758 = sbr.rel (%p1756) target = $region48
        $region47: #{forward.1} parent=43 // pred_region
          %p1759 = scmp.lt.s32.totalorder %s16, 1
          %s1760 = scalar_select %p1759, %s16, 1
          %s1761 = smul.addr %s1760, 4
          %s1762 = smul.addr %s1761, 8
          %s1763 = scalar_lea.vmem %s3, %s1762
        $region48: #{forward.1} parent=43 // pred_fallthru
          _
      $region44: #{forward.1} parent=5 // pred_fallthru
        _
    $region6: #{forward.1} parent=1 // loop_footer
      %s14 = sadd.s32 1, %s10
    $region7: #{forward.1} parent=1 // loop_footer_branch
      %9 = sbr.rel target = $region3
    $region8: #{forward.1} parent=1 // loop_exit
      _
    %1764 = vsyncpa [#allocation6], 1
    %s1765 = scalar_lea.sflag [#allocation6], 1
    %1766 = vsyncpa %s1765, 1

</llo_original>
